<compile_context>
chip_gen: v7x
topology: tpu7x:2x2x1
jax: 0.10.0
libtpu: 0.0.40
codegen_flags: <defaults>
</compile_context>

<pallas_src>
import functools

import jax
import jax.numpy as jnp
from jax.experimental import pallas as pl
from jax.experimental.pallas import tpu as pltpu


def _make_embed_rnn_kernel(num_layers, Bp, T, D, H):
    """Build the kernel body. All shapes are static and closed over."""
    L = num_layers
    G = 4 * H  # gate width (== 128 lanes by construction)

    def kernel(*refs):
        # refs layout (inputs, then output, then scratch):
        #   x_ref       (T*Bp, D)  bf16  time-major, batch-padded traffic input
        #   bias_ref    (Bp, D)    f32   wd_emb@W_wd + hr_emb@W_hr + out_b (precomputed)
        #   w_ih0_ref   (D, 4H)    bf16  layer-0 input weights
        #   b0_ref      (1, 4H)    f32   layer-0 fused bias (b_ih + b_hh)
        #   w_fused_l   (H, 8H)    bf16  [W_hh_l | W_ih_{l+1}]   for l < L-1
        #               (H, 4H)    bf16  W_hh_{L-1}              for the last layer
        #   b_next_l    (1, 4H)    f32   fused bias of layer l+1 for l < L-1
        #   ow_h_ref    (H, D)     bf16  hidden part of the output linear
        #   out_ref     (Bp, D)    f32
        #   g0_ref      (T*Bp, 4H) f32   VMEM scratch: hoisted layer-0 projection
        x_ref, bias_ref, w_ih0_ref, b0_ref = refs[0:4]
        w_fused_refs = refs[4:4 + L]
        b_next_refs = refs[4 + L:3 + 2 * L]
        ow_h_ref = refs[3 + 2 * L]
        out_ref = refs[4 + 2 * L]
        g0_ref = refs[5 + 2 * L]

        # Layer-0 input projection for every timestep: one batched MXU matmul,
        # hoisted entirely out of the recurrence. Lane-dense (4H = 128) result.
        g0_ref[...] = (
            jnp.dot(x_ref[...], w_ih0_ref[...], preferred_element_type=jnp.float32)
            + b0_ref[...]
        )

        # Load the tiny recurrent weights once (kept resident by the compiler).
        w_fused = [w_fused_refs[l][...] for l in range(L)]
        b_next = [b_next_refs[l][...] for l in range(L - 1)]

        # Per-layer recurrent state, carried as SSA values (fully unrolled).
        hh = [None] * L          # h_{t-1} @ W_hh  (precomputed by the previous step)
        cc = [None] * L          # cell state
        gx_pending = [None] * L  # gate input from the layer below, for this layer's t
        h_out = [None]           # last layer, last timestep hidden state

        def step(layer, t, gx):
            """One LSTM cell update for (layer, t). gx already contains x-proj + bias."""
            h_contrib = hh[layer]
            gates = gx if h_contrib is None else gx + h_contrib   # (Bp, 4H) f32
            # Full-width EUP issues (one sigmoid + one tanh over the whole vreg),
            # then lane-slice.  PyTorch gate order: i, f, g, o.
            sig = jax.nn.sigmoid(gates)
            tnh = jnp.tanh(gates)
            i_g = sig[:, 0:H]
            f_g = sig[:, H:2 * H]
            o_g = sig[:, 3 * H:4 * H]
            g_g = tnh[:, 2 * H:3 * H]
            c_prev = cc[layer]
            c_new = i_g * g_g if c_prev is None else f_g * c_prev + i_g * g_g
            h_new = o_g * jnp.tanh(c_new)
            cc[layer] = c_new

            last_layer = layer == L - 1
            last_t = t == T - 1
            if last_layer and last_t:
                h_out[0] = h_new
                return
            # Single fused MXU push: columns [0:4H] -> this layer's next-step
            # hidden contribution, columns [4H:8H] -> the next layer's gate input.
            fused = jnp.dot(h_new.astype(jnp.bfloat16), w_fused[layer],
                            preferred_element_type=jnp.float32)
            hh[layer] = fused[:, 0:G]
            if not last_layer:
                gx_pending[layer + 1] = fused[:, G:2 * G] + b_next[layer]

        # Wavefront: all (layer, t) with layer + t == wave are mutually independent.
        # Deeper layers first within a wave so gx_pending[l] is consumed (value from
        # the previous wave) before layer l-1 overwrites it for the next wave.
        for wave in range(T + L - 1):
            for layer in reversed(range(L)):
                t = wave - layer
                if t < 0 or t >= T:
                    continue
                if layer == 0:
                    gx = g0_ref[pl.ds(t * Bp, Bp), :]   # 8-sublane aligned, unmasked
                else:
                    gx = gx_pending[layer]
                step(layer, t, gx)

        # out = h_last @ W_out[:, :H].T + (embedding terms + out bias) [precomputed].
        out = (jnp.dot(h_out[0].astype(jnp.bfloat16), ow_h_ref[...],
                       preferred_element_type=jnp.float32)
               + bias_ref[...])
        out_ref[...] = out.astype(out_ref.dtype)

    return kernel


def embed_rnn_forward(x, params, *, traffic_dim, hour_embed_dim, week_day_embed_dim,
                      rnn_hidden_size, rnn_num_layers):
    """Forward pass equivalent to EmbedRNN.forward(x)."""
    B, T, _ = x.shape
    D = traffic_dim
    H = rnn_hidden_size
    L = rnn_num_layers
    # Kernel assumes lane-dense gates and small static shapes.
    assert 4 * H == 128, "kernel assumes 4*hidden == 128 lanes"
    Bp = ((B + 7) // 8) * 8          # pad batch to a sublane multiple (min 8)

    x = x.astype(jnp.float32)
    x_traffic = x[:, :, :D]                                   # (B, T, D)
    wd_idx = x[:, -1, -2].astype(jnp.int32)                   # (B,)
    hr_idx = x[:, -1, -1].astype(jnp.int32)                   # (B,)

    # Embedding lookups (gathers) — plain-JAX glue.
    wd_emb = params["week_day_embeds"][wd_idx]                # (B, Ewd)
    hr_emb = params["hour_embeds"][hr_idx]                    # (B, Ehr)

    # Time-major, batch padded to Bp sublanes, flattened, bf16 traffic input.
    x_tb = jnp.transpose(x_traffic, (1, 0, 2))                # (T, B, D)
    x_tb = jnp.pad(x_tb, ((0, 0), (0, Bp - B), (0, 0)))       # (T, Bp, D)
    x_tb = x_tb.reshape(T * Bp, D).astype(jnp.bfloat16)

    # Layer-0 input weights + fused bias.
    w_ih0 = params["w_ih_l0"].T.astype(jnp.bfloat16)          # (D, 4H)
    b0 = (params["b_ih_l0"] + params["b_hh_l0"]).reshape(1, 4 * H).astype(jnp.float32)

    # Fused recurrent RHS per layer: [W_hh_l | W_ih_{l+1}] (H, 8H) bf16 so each
    # timestep is one MXU push.  Last layer keeps just W_hh (H, 4H).
    w_fused = []
    b_next = []
    for l in range(L):
        w_hh = params[f"w_hh_l{l}"].T                         # (H, 4H)
        if l < L - 1:
            w_ih_next = params[f"w_ih_l{l + 1}"].T            # (H, 4H)
            w_fused.append(
                jnp.concatenate([w_hh, w_ih_next], axis=1).astype(jnp.bfloat16))
            b_next.append(
                (params[f"b_ih_l{l + 1}"] + params[f"b_hh_l{l + 1}"])
                .reshape(1, 4 * H).astype(jnp.float32))
        else:
            w_fused.append(w_hh.astype(jnp.bfloat16))

    # Split the output linear weight into the three concat segments.
    W_out = params["out_w"]                                   # (D, H+Ewd+Ehr)
    ow_h = W_out[:, :H].T.astype(jnp.bfloat16)                # (H, D)
    ow_wd = W_out[:, H:H + week_day_embed_dim].T              # (Ewd, D) f32
    ow_hr = W_out[:, H + week_day_embed_dim:].T               # (Ehr, D) f32
    # Embedding path + bias is recurrence-independent: fold into one (Bp, D) term
    # outside the kernel so XLA overlaps it with the recurrent kernel.
    out_bias = (wd_emb @ ow_wd + hr_emb @ ow_hr
                + params["out_b"].reshape(1, D)).astype(jnp.float32)
    out_bias = jnp.pad(out_bias, ((0, Bp - B), (0, 0)))       # (Bp, D)

    kernel = _make_embed_rnn_kernel(L, Bp, T, D, H)
    all_inputs = [x_tb, out_bias, w_ih0, b0] + w_fused + b_next + [ow_h]
    vmem_spec = pl.BlockSpec(memory_space=pltpu.MemorySpace.VMEM)

    # Advisory cost estimate so XLA schedules the recurrence-independent work
    # (embedding matmuls, transpose/cast) concurrently with the kernel.
    flops = 2 * (T * Bp) * D * (4 * H)
    flops += sum(2 * T * Bp * H * int(w.shape[1]) for w in w_fused)
    flops += 2 * Bp * H * D
    transcendentals = L * T * Bp * 9 * H       # sigmoid(4H) + tanh(4H) + tanh(H) per step
    bytes_accessed = (sum(int(a.size) * a.dtype.itemsize for a in all_inputs)
                      + Bp * D * 4)

    out = pl.pallas_call(
        kernel,
        out_shape=jax.ShapeDtypeStruct((Bp, D), jnp.float32),
        in_specs=[vmem_spec] * len(all_inputs),
        out_specs=vmem_spec,
        scratch_shapes=[pltpu.VMEM((T * Bp, 4 * H), jnp.float32)],
        cost_estimate=pl.CostEstimate(flops=flops,
                                      transcendentals=transcendentals,
                                      bytes_accessed=bytes_accessed),
    )(*all_inputs)
    return out[:B]


def embed_rnn_reference(x, params, *, traffic_dim, hour_embed_dim, week_day_embed_dim,
                        rnn_hidden_size, rnn_num_layers):
    """Pure-JAX f32 reference matching PyTorch EmbedRNN.forward semantics."""
    B, T, _ = x.shape
    D, H, L = traffic_dim, rnn_hidden_size, rnn_num_layers
    x = x.astype(jnp.float32)
    seq = x[:, :, :D]
    wd_emb = params["week_day_embeds"][x[:, -1, -2].astype(jnp.int32)]
    hr_emb = params["hour_embeds"][x[:, -1, -1].astype(jnp.int32)]
    for l in range(L):
        w_ih, w_hh = params[f"w_ih_l{l}"], params[f"w_hh_l{l}"]
        b = params[f"b_ih_l{l}"] + params[f"b_hh_l{l}"]
        h = jnp.zeros((B, H), jnp.float32)
        c = jnp.zeros((B, H), jnp.float32)
        outs = []
        for t in range(T):
            gates = seq[:, t, :] @ w_ih.T + h @ w_hh.T + b
            i_g = jax.nn.sigmoid(gates[:, 0:H])
            f_g = jax.nn.sigmoid(gates[:, H:2 * H])
            g_g = jnp.tanh(gates[:, 2 * H:3 * H])
            o_g = jax.nn.sigmoid(gates[:, 3 * H:4 * H])
            c = f_g * c + i_g * g_g
            h = o_g * jnp.tanh(c)
            outs.append(h)
        seq = jnp.stack(outs, axis=1)
    out_input = jnp.concatenate([seq[:, -1, :], wd_emb, hr_emb], axis=1)
    return out_input @ params["out_w"].T + params["out_b"]


def init_params(key, *, traffic_dim, hour_embed_dim, week_day_embed_dim,
                rnn_hidden_size, rnn_num_layers):
    D, H, L = traffic_dim, rnn_hidden_size, rnn_num_layers
    keys = jax.random.split(key, 4 + 4 * L + 2)
    ki = iter(keys)
    params = {
        "hour_embeds": 0.1 * jax.random.normal(next(ki), (24, hour_embed_dim), jnp.float32),
        "week_day_embeds": 0.1 * jax.random.normal(next(ki), (7, week_day_embed_dim), jnp.float32),
    }
    for l in range(L):
        in_dim = D if l == 0 else H
        params[f"w_ih_l{l}"] = 0.1 * jax.random.normal(next(ki), (4 * H, in_dim), jnp.float32)
        params[f"w_hh_l{l}"] = 0.1 * jax.random.normal(next(ki), (4 * H, H), jnp.float32)
        params[f"b_ih_l{l}"] = 0.01 * jax.random.normal(next(ki), (4 * H,), jnp.float32)
        params[f"b_hh_l{l}"] = 0.01 * jax.random.normal(next(ki), (4 * H,), jnp.float32)
    params["out_w"] = 0.1 * jax.random.normal(
        next(ki), (D, H + week_day_embed_dim + hour_embed_dim), jnp.float32)
    params["out_b"] = 0.01 * jax.random.normal(next(ki), (D,), jnp.float32)
    return params


if __name__ == "__main__":
    # Small shapes consistent with the module.
    B, T = 2, 8
    traffic_dim = 16
    hour_embed_dim = 8
    week_day_embed_dim = 4
    rnn_hidden_size = 32
    rnn_num_layers = 2

    key = jax.random.PRNGKey(0)
    k_traffic, k_wd, k_hr, k_params = jax.random.split(key, 4)

    traffic = jax.random.normal(k_traffic, (B, T, traffic_dim), jnp.float32)
    week_day = jax.random.randint(k_wd, (B, T, 1), 0, 7).astype(jnp.float32)
    hour = jax.random.randint(k_hr, (B, T, 1), 0, 24).astype(jnp.float32)
    x = jnp.concatenate([traffic, week_day, hour], axis=-1)   # (B, T, traffic_dim + 2)

    params = init_params(
        k_params,
        traffic_dim=traffic_dim,
        hour_embed_dim=hour_embed_dim,
        week_day_embed_dim=week_day_embed_dim,
        rnn_hidden_size=rnn_hidden_size,
        rnn_num_layers=rnn_num_layers,
    )

    cfg = dict(
        traffic_dim=traffic_dim,
        hour_embed_dim=hour_embed_dim,
        week_day_embed_dim=week_day_embed_dim,
        rnn_hidden_size=rnn_hidden_size,
        rnn_num_layers=rnn_num_layers,
    )
    fwd = jax.jit(functools.partial(embed_rnn_forward, **cfg))

    out = fwd(x, params)
    out = jax.block_until_ready(out)
    assert out.shape == (B, traffic_dim)

    # Loose tolerance: kernel runs matmuls in bf16 with f32 accumulation.
    ref = jax.block_until_ready(embed_rnn_reference(x, params, **cfg))
    max_err = float(jnp.max(jnp.abs(out - ref)))
    assert max_err < 1e-1, f"max abs err {max_err}"

    print("KERNEL_OK")
</pallas_src>

<mosaic_0001>
module attributes {stable_mosaic.version = 11 : i64} {
  func.func @kernel(%arg0: memref<64x16xbf16, #tpu.memory_space<vmem>>, %arg1: memref<8x16xf32, #tpu.memory_space<vmem>>, %arg2: memref<16x128xbf16, #tpu.memory_space<vmem>>, %arg3: memref<1x128xf32, #tpu.memory_space<vmem>>, %arg4: memref<32x256xbf16, #tpu.memory_space<vmem>>, %arg5: memref<32x128xbf16, #tpu.memory_space<vmem>>, %arg6: memref<1x128xf32, #tpu.memory_space<vmem>>, %arg7: memref<32x16xbf16, #tpu.memory_space<vmem>>, %arg8: memref<8x16xf32, #tpu.memory_space<vmem>>, %arg9: memref<64x128xf32, #tpu.memory_space<vmem>>) attributes {dimension_semantics = [], scalar_prefetch = 0 : i64, scratch_operands = 1 : i64, tpu.core_type = #tpu.core_type<tc>} {
    %c0 = arith.constant 0 : index
    %c0_0 = arith.constant 0 : index
    %0 = vector.load %arg0[%c0, %c0_0] : memref<64x16xbf16, #tpu.memory_space<vmem>>, vector<64x16xbf16>
    %c0_1 = arith.constant 0 : index
    %c0_2 = arith.constant 0 : index
    %1 = vector.load %arg2[%c0_1, %c0_2] : memref<16x128xbf16, #tpu.memory_space<vmem>>, vector<16x128xbf16>
    %cst = arith.constant dense<0.000000e+00> : vector<64x128xf32>
    %2 = tpu.matmul %0, %1, %cst {dimension_numbers = #tpu.dot_dimension_numbers<[1], [0], [0], [1], [0, 0, 1, 1], [], []>} : vector<64x16xbf16>, vector<16x128xbf16>, vector<64x128xf32> -> vector<64x128xf32>
    %c0_3 = arith.constant 0 : index
    %c0_4 = arith.constant 0 : index
    %3 = vector.load %arg3[%c0_3, %c0_4] : memref<1x128xf32, #tpu.memory_space<vmem>>, vector<1x128xf32>
    %4 = vector.broadcast %3 : vector<1x128xf32> to vector<64x128xf32>
    %5 = arith.addf %2, %4 : vector<64x128xf32>
    %c0_5 = arith.constant 0 : index
    %c0_6 = arith.constant 0 : index
    %6 = vector.load %arg9[%c0_5, %c0_6] : memref<64x128xf32, #tpu.memory_space<vmem>>, vector<64x128xf32>
    tpu.vector_store %arg9[%c0_5, %c0_6], %5 {strides = array<i32>} : memref<64x128xf32, #tpu.memory_space<vmem>>, vector<64x128xf32>,
    %c0_7 = arith.constant 0 : index
    %c0_8 = arith.constant 0 : index
    %7 = vector.load %arg4[%c0_7, %c0_8] : memref<32x256xbf16, #tpu.memory_space<vmem>>, vector<32x256xbf16>
    %c0_9 = arith.constant 0 : index
    %c0_10 = arith.constant 0 : index
    %8 = vector.load %arg5[%c0_9, %c0_10] : memref<32x128xbf16, #tpu.memory_space<vmem>>, vector<32x128xbf16>
    %c0_11 = arith.constant 0 : index
    %c0_12 = arith.constant 0 : index
    %9 = vector.load %arg6[%c0_11, %c0_12] : memref<1x128xf32, #tpu.memory_space<vmem>>, vector<1x128xf32>
    %c0_13 = arith.constant 0 : index
    %c0_14 = arith.constant 0 : index
    %10 = vector.load %arg9[%c0_13, %c0_14] : memref<64x128xf32, #tpu.memory_space<vmem>>, vector<8x128xf32>
    %11 = arith.negf %10 : vector<8x128xf32>
    %12 = math.exp %11 : vector<8x128xf32>
    %cst_15 = arith.constant 1.000000e+00 : f32
    %13 = vector.broadcast %cst_15 : f32 to vector<8x128xf32>
    %14 = arith.addf %13, %12 : vector<8x128xf32>
    %15 = arith.divf %13, %14 : vector<8x128xf32>
    %16 = math.tanh %10 : vector<8x128xf32>
    %17 = vector.extract_strided_slice %15 {offsets = [0, 0], sizes = [8, 32], strides = [1, 1]} : vector<8x128xf32> to vector<8x32xf32>
    %18 = vector.extract_strided_slice %15 {offsets = [0, 96], sizes = [8, 32], strides = [1, 1]} : vector<8x128xf32> to vector<8x32xf32>
    %19 = vector.extract_strided_slice %16 {offsets = [0, 64], sizes = [8, 32], strides = [1, 1]} : vector<8x128xf32> to vector<8x32xf32>
    %20 = arith.mulf %17, %19 : vector<8x32xf32>
    %21 = math.tanh %20 : vector<8x32xf32>
    %22 = arith.mulf %18, %21 : vector<8x32xf32>
    %23 = arith.truncf %22 : vector<8x32xf32> to vector<8x32xbf16>
    %cst_16 = arith.constant dense<0.000000e+00> : vector<8x256xf32>
    %24 = tpu.matmul %23, %7, %cst_16 {dimension_numbers = #tpu.dot_dimension_numbers<[1], [0], [0], [1], [0, 0, 1, 1], [], []>} : vector<8x32xbf16>, vector<32x256xbf16>, vector<8x256xf32> -> vector<8x256xf32>
    %25 = vector.extract_strided_slice %24 {offsets = [0, 0], sizes = [8, 128], strides = [1, 1]} : vector<8x256xf32> to vector<8x128xf32>
    %26 = vector.extract_strided_slice %24 {offsets = [0, 128], sizes = [8, 128], strides = [1, 1]} : vector<8x256xf32> to vector<8x128xf32>
    %27 = vector.broadcast %9 : vector<1x128xf32> to vector<8x128xf32>
    %28 = arith.addf %26, %27 : vector<8x128xf32>
    %29 = arith.negf %28 : vector<8x128xf32>
    %30 = math.exp %29 : vector<8x128xf32>
    %cst_17 = arith.constant 1.000000e+00 : f32
    %31 = vector.broadcast %cst_17 : f32 to vector<8x128xf32>
    %32 = arith.addf %31, %30 : vector<8x128xf32>
    %33 = arith.divf %31, %32 : vector<8x128xf32>
    %34 = math.tanh %28 : vector<8x128xf32>
    %35 = vector.extract_strided_slice %33 {offsets = [0, 0], sizes = [8, 32], strides = [1, 1]} : vector<8x128xf32> to vector<8x32xf32>
    %36 = vector.extract_strided_slice %33 {offsets = [0, 96], sizes = [8, 32], strides = [1, 1]} : vector<8x128xf32> to vector<8x32xf32>
    %37 = vector.extract_strided_slice %34 {offsets = [0, 64], sizes = [8, 32], strides = [1, 1]} : vector<8x128xf32> to vector<8x32xf32>
    %38 = arith.mulf %35, %37 : vector<8x32xf32>
    %39 = math.tanh %38 : vector<8x32xf32>
    %40 = arith.mulf %36, %39 : vector<8x32xf32>
    %41 = arith.truncf %40 : vector<8x32xf32> to vector<8x32xbf16>
    %cst_18 = arith.constant dense<0.000000e+00> : vector<8x128xf32>
    %42 = tpu.matmul %41, %8, %cst_18 {dimension_numbers = #tpu.dot_dimension_numbers<[1], [0], [0], [1], [0, 0, 1, 1], [], []>} : vector<8x32xbf16>, vector<32x128xbf16>, vector<8x128xf32> -> vector<8x128xf32>
    %c8 = arith.constant 8 : index
    %c0_19 = arith.constant 0 : index
    %43 = vector.load %arg9[%c8, %c0_19] : memref<64x128xf32, #tpu.memory_space<vmem>>, vector<8x128xf32>
    %44 = arith.addf %43, %25 : vector<8x128xf32>
    %45 = arith.negf %44 : vector<8x128xf32>
    %46 = math.exp %45 : vector<8x128xf32>
    %cst_20 = arith.constant 1.000000e+00 : f32
    %47 = vector.broadcast %cst_20 : f32 to vector<8x128xf32>
    %48 = arith.addf %47, %46 : vector<8x128xf32>
    %49 = arith.divf %47, %48 : vector<8x128xf32>
    %50 = math.tanh %44 : vector<8x128xf32>
    %51 = vector.extract_strided_slice %49 {offsets = [0, 0], sizes = [8, 32], strides = [1, 1]} : vector<8x128xf32> to vector<8x32xf32>
    %52 = vector.extract_strided_slice %49 {offsets = [0, 32], sizes = [8, 32], strides = [1, 1]} : vector<8x128xf32> to vector<8x32xf32>
    %53 = vector.extract_strided_slice %49 {offsets = [0, 96], sizes = [8, 32], strides = [1, 1]} : vector<8x128xf32> to vector<8x32xf32>
    %54 = vector.extract_strided_slice %50 {offsets = [0, 64], sizes = [8, 32], strides = [1, 1]} : vector<8x128xf32> to vector<8x32xf32>
    %55 = arith.mulf %52, %20 : vector<8x32xf32>
    %56 = arith.mulf %51, %54 : vector<8x32xf32>
    %57 = arith.addf %55, %56 : vector<8x32xf32>
    %58 = math.tanh %57 : vector<8x32xf32>
    %59 = arith.mulf %53, %58 : vector<8x32xf32>
    %60 = arith.truncf %59 : vector<8x32xf32> to vector<8x32xbf16>
    %cst_21 = arith.constant dense<0.000000e+00> : vector<8x256xf32>
    %61 = tpu.matmul %60, %7, %cst_21 {dimension_numbers = #tpu.dot_dimension_numbers<[1], [0], [0], [1], [0, 0, 1, 1], [], []>} : vector<8x32xbf16>, vector<32x256xbf16>, vector<8x256xf32> -> vector<8x256xf32>
    %62 = vector.extract_strided_slice %61 {offsets = [0, 0], sizes = [8, 128], strides = [1, 1]} : vector<8x256xf32> to vector<8x128xf32>
    %63 = vector.extract_strided_slice %61 {offsets = [0, 128], sizes = [8, 128], strides = [1, 1]} : vector<8x256xf32> to vector<8x128xf32>
    %64 = vector.broadcast %9 : vector<1x128xf32> to vector<8x128xf32>
    %65 = arith.addf %63, %64 : vector<8x128xf32>
    %66 = arith.addf %65, %42 : vector<8x128xf32>
    %67 = arith.negf %66 : vector<8x128xf32>
    %68 = math.exp %67 : vector<8x128xf32>
    %cst_22 = arith.constant 1.000000e+00 : f32
    %69 = vector.broadcast %cst_22 : f32 to vector<8x128xf32>
    %70 = arith.addf %69, %68 : vector<8x128xf32>
    %71 = arith.divf %69, %70 : vector<8x128xf32>
    %72 = math.tanh %66 : vector<8x128xf32>
    %73 = vector.extract_strided_slice %71 {offsets = [0, 0], sizes = [8, 32], strides = [1, 1]} : vector<8x128xf32> to vector<8x32xf32>
    %74 = vector.extract_strided_slice %71 {offsets = [0, 32], sizes = [8, 32], strides = [1, 1]} : vector<8x128xf32> to vector<8x32xf32>
    %75 = vector.extract_strided_slice %71 {offsets = [0, 96], sizes = [8, 32], strides = [1, 1]} : vector<8x128xf32> to vector<8x32xf32>
    %76 = vector.extract_strided_slice %72 {offsets = [0, 64], sizes = [8, 32], strides = [1, 1]} : vector<8x128xf32> to vector<8x32xf32>
    %77 = arith.mulf %74, %38 : vector<8x32xf32>
    %78 = arith.mulf %73, %76 : vector<8x32xf32>
    %79 = arith.addf %77, %78 : vector<8x32xf32>
    %80 = math.tanh %79 : vector<8x32xf32>
    %81 = arith.mulf %75, %80 : vector<8x32xf32>
    %82 = arith.truncf %81 : vector<8x32xf32> to vector<8x32xbf16>
    %cst_23 = arith.constant dense<0.000000e+00> : vector<8x128xf32>
    %83 = tpu.matmul %82, %8, %cst_23 {dimension_numbers = #tpu.dot_dimension_numbers<[1], [0], [0], [1], [0, 0, 1, 1], [], []>} : vector<8x32xbf16>, vector<32x128xbf16>, vector<8x128xf32> -> vector<8x128xf32>
    %c16 = arith.constant 16 : index
    %c0_24 = arith.constant 0 : index
    %84 = vector.load %arg9[%c16, %c0_24] : memref<64x128xf32, #tpu.memory_space<vmem>>, vector<8x128xf32>
    %85 = arith.addf %84, %62 : vector<8x128xf32>
    %86 = arith.negf %85 : vector<8x128xf32>
    %87 = math.exp %86 : vector<8x128xf32>
    %cst_25 = arith.constant 1.000000e+00 : f32
    %88 = vector.broadcast %cst_25 : f32 to vector<8x128xf32>
    %89 = arith.addf %88, %87 : vector<8x128xf32>
    %90 = arith.divf %88, %89 : vector<8x128xf32>
    %91 = math.tanh %85 : vector<8x128xf32>
    %92 = vector.extract_strided_slice %90 {offsets = [0, 0], sizes = [8, 32], strides = [1, 1]} : vector<8x128xf32> to vector<8x32xf32>
    %93 = vector.extract_strided_slice %90 {offsets = [0, 32], sizes = [8, 32], strides = [1, 1]} : vector<8x128xf32> to vector<8x32xf32>
    %94 = vector.extract_strided_slice %90 {offsets = [0, 96], sizes = [8, 32], strides = [1, 1]} : vector<8x128xf32> to vector<8x32xf32>
    %95 = vector.extract_strided_slice %91 {offsets = [0, 64], sizes = [8, 32], strides = [1, 1]} : vector<8x128xf32> to vector<8x32xf32>
    %96 = arith.mulf %93, %57 : vector<8x32xf32>
    %97 = arith.mulf %92, %95 : vector<8x32xf32>
    %98 = arith.addf %96, %97 : vector<8x32xf32>
    %99 = math.tanh %98 : vector<8x32xf32>
    %100 = arith.mulf %94, %99 : vector<8x32xf32>
    %101 = arith.truncf %100 : vector<8x32xf32> to vector<8x32xbf16>
    %cst_26 = arith.constant dense<0.000000e+00> : vector<8x256xf32>
    %102 = tpu.matmul %101, %7, %cst_26 {dimension_numbers = #tpu.dot_dimension_numbers<[1], [0], [0], [1], [0, 0, 1, 1], [], []>} : vector<8x32xbf16>, vector<32x256xbf16>, vector<8x256xf32> -> vector<8x256xf32>
    %103 = vector.extract_strided_slice %102 {offsets = [0, 0], sizes = [8, 128], strides = [1, 1]} : vector<8x256xf32> to vector<8x128xf32>
    %104 = vector.extract_strided_slice %102 {offsets = [0, 128], sizes = [8, 128], strides = [1, 1]} : vector<8x256xf32> to vector<8x128xf32>
    %105 = vector.broadcast %9 : vector<1x128xf32> to vector<8x128xf32>
    %106 = arith.addf %104, %105 : vector<8x128xf32>
    %107 = arith.addf %106, %83 : vector<8x128xf32>
    %108 = arith.negf %107 : vector<8x128xf32>
    %109 = math.exp %108 : vector<8x128xf32>
    %cst_27 = arith.constant 1.000000e+00 : f32
    %110 = vector.broadcast %cst_27 : f32 to vector<8x128xf32>
    %111 = arith.addf %110, %109 : vector<8x128xf32>
    %112 = arith.divf %110, %111 : vector<8x128xf32>
    %113 = math.tanh %107 : vector<8x128xf32>
    %114 = vector.extract_strided_slice %112 {offsets = [0, 0], sizes = [8, 32], strides = [1, 1]} : vector<8x128xf32> to vector<8x32xf32>
    %115 = vector.extract_strided_slice %112 {offsets = [0, 32], sizes = [8, 32], strides = [1, 1]} : vector<8x128xf32> to vector<8x32xf32>
    %116 = vector.extract_strided_slice %112 {offsets = [0, 96], sizes = [8, 32], strides = [1, 1]} : vector<8x128xf32> to vector<8x32xf32>
    %117 = vector.extract_strided_slice %113 {offsets = [0, 64], sizes = [8, 32], strides = [1, 1]} : vector<8x128xf32> to vector<8x32xf32>
    %118 = arith.mulf %115, %79 : vector<8x32xf32>
    %119 = arith.mulf %114, %117 : vector<8x32xf32>
    %120 = arith.addf %118, %119 : vector<8x32xf32>
    %121 = math.tanh %120 : vector<8x32xf32>
    %122 = arith.mulf %116, %121 : vector<8x32xf32>
    %123 = arith.truncf %122 : vector<8x32xf32> to vector<8x32xbf16>
    %cst_28 = arith.constant dense<0.000000e+00> : vector<8x128xf32>
    %124 = tpu.matmul %123, %8, %cst_28 {dimension_numbers = #tpu.dot_dimension_numbers<[1], [0], [0], [1], [0, 0, 1, 1], [], []>} : vector<8x32xbf16>, vector<32x128xbf16>, vector<8x128xf32> -> vector<8x128xf32>
    %c24 = arith.constant 24 : index
    %c0_29 = arith.constant 0 : index
    %125 = vector.load %arg9[%c24, %c0_29] : memref<64x128xf32, #tpu.memory_space<vmem>>, vector<8x128xf32>
    %126 = arith.addf %125, %103 : vector<8x128xf32>
    %127 = arith.negf %126 : vector<8x128xf32>
    %128 = math.exp %127 : vector<8x128xf32>
    %cst_30 = arith.constant 1.000000e+00 : f32
    %129 = vector.broadcast %cst_30 : f32 to vector<8x128xf32>
    %130 = arith.addf %129, %128 : vector<8x128xf32>
    %131 = arith.divf %129, %130 : vector<8x128xf32>
    %132 = math.tanh %126 : vector<8x128xf32>
    %133 = vector.extract_strided_slice %131 {offsets = [0, 0], sizes = [8, 32], strides = [1, 1]} : vector<8x128xf32> to vector<8x32xf32>
    %134 = vector.extract_strided_slice %131 {offsets = [0, 32], sizes = [8, 32], strides = [1, 1]} : vector<8x128xf32> to vector<8x32xf32>
    %135 = vector.extract_strided_slice %131 {offsets = [0, 96], sizes = [8, 32], strides = [1, 1]} : vector<8x128xf32> to vector<8x32xf32>
    %136 = vector.extract_strided_slice %132 {offsets = [0, 64], sizes = [8, 32], strides = [1, 1]} : vector<8x128xf32> to vector<8x32xf32>
    %137 = arith.mulf %134, %98 : vector<8x32xf32>
    %138 = arith.mulf %133, %136 : vector<8x32xf32>
    %139 = arith.addf %137, %138 : vector<8x32xf32>
    %140 = math.tanh %139 : vector<8x32xf32>
    %141 = arith.mulf %135, %140 : vector<8x32xf32>
    %142 = arith.truncf %141 : vector<8x32xf32> to vector<8x32xbf16>
    %cst_31 = arith.constant dense<0.000000e+00> : vector<8x256xf32>
    %143 = tpu.matmul %142, %7, %cst_31 {dimension_numbers = #tpu.dot_dimension_numbers<[1], [0], [0], [1], [0, 0, 1, 1], [], []>} : vector<8x32xbf16>, vector<32x256xbf16>, vector<8x256xf32> -> vector<8x256xf32>
    %144 = vector.extract_strided_slice %143 {offsets = [0, 0], sizes = [8, 128], strides = [1, 1]} : vector<8x256xf32> to vector<8x128xf32>
    %145 = vector.extract_strided_slice %143 {offsets = [0, 128], sizes = [8, 128], strides = [1, 1]} : vector<8x256xf32> to vector<8x128xf32>
    %146 = vector.broadcast %9 : vector<1x128xf32> to vector<8x128xf32>
    %147 = arith.addf %145, %146 : vector<8x128xf32>
    %148 = arith.addf %147, %124 : vector<8x128xf32>
    %149 = arith.negf %148 : vector<8x128xf32>
    %150 = math.exp %149 : vector<8x128xf32>
    %cst_32 = arith.constant 1.000000e+00 : f32
    %151 = vector.broadcast %cst_32 : f32 to vector<8x128xf32>
    %152 = arith.addf %151, %150 : vector<8x128xf32>
    %153 = arith.divf %151, %152 : vector<8x128xf32>
    %154 = math.tanh %148 : vector<8x128xf32>
    %155 = vector.extract_strided_slice %153 {offsets = [0, 0], sizes = [8, 32], strides = [1, 1]} : vector<8x128xf32> to vector<8x32xf32>
    %156 = vector.extract_strided_slice %153 {offsets = [0, 32], sizes = [8, 32], strides = [1, 1]} : vector<8x128xf32> to vector<8x32xf32>
    %157 = vector.extract_strided_slice %153 {offsets = [0, 96], sizes = [8, 32], strides = [1, 1]} : vector<8x128xf32> to vector<8x32xf32>
    %158 = vector.extract_strided_slice %154 {offsets = [0, 64], sizes = [8, 32], strides = [1, 1]} : vector<8x128xf32> to vector<8x32xf32>
    %159 = arith.mulf %156, %120 : vector<8x32xf32>
    %160 = arith.mulf %155, %158 : vector<8x32xf32>
    %161 = arith.addf %159, %160 : vector<8x32xf32>
    %162 = math.tanh %161 : vector<8x32xf32>
    %163 = arith.mulf %157, %162 : vector<8x32xf32>
    %164 = arith.truncf %163 : vector<8x32xf32> to vector<8x32xbf16>
    %cst_33 = arith.constant dense<0.000000e+00> : vector<8x128xf32>
    %165 = tpu.matmul %164, %8, %cst_33 {dimension_numbers = #tpu.dot_dimension_numbers<[1], [0], [0], [1], [0, 0, 1, 1], [], []>} : vector<8x32xbf16>, vector<32x128xbf16>, vector<8x128xf32> -> vector<8x128xf32>
    %c32 = arith.constant 32 : index
    %c0_34 = arith.constant 0 : index
    %166 = vector.load %arg9[%c32, %c0_34] : memref<64x128xf32, #tpu.memory_space<vmem>>, vector<8x128xf32>
    %167 = arith.addf %166, %144 : vector<8x128xf32>
    %168 = arith.negf %167 : vector<8x128xf32>
    %169 = math.exp %168 : vector<8x128xf32>
    %cst_35 = arith.constant 1.000000e+00 : f32
    %170 = vector.broadcast %cst_35 : f32 to vector<8x128xf32>
    %171 = arith.addf %170, %169 : vector<8x128xf32>
    %172 = arith.divf %170, %171 : vector<8x128xf32>
    %173 = math.tanh %167 : vector<8x128xf32>
    %174 = vector.extract_strided_slice %172 {offsets = [0, 0], sizes = [8, 32], strides = [1, 1]} : vector<8x128xf32> to vector<8x32xf32>
    %175 = vector.extract_strided_slice %172 {offsets = [0, 32], sizes = [8, 32], strides = [1, 1]} : vector<8x128xf32> to vector<8x32xf32>
    %176 = vector.extract_strided_slice %172 {offsets = [0, 96], sizes = [8, 32], strides = [1, 1]} : vector<8x128xf32> to vector<8x32xf32>
    %177 = vector.extract_strided_slice %173 {offsets = [0, 64], sizes = [8, 32], strides = [1, 1]} : vector<8x128xf32> to vector<8x32xf32>
    %178 = arith.mulf %175, %139 : vector<8x32xf32>
    %179 = arith.mulf %174, %177 : vector<8x32xf32>
    %180 = arith.addf %178, %179 : vector<8x32xf32>
    %181 = math.tanh %180 : vector<8x32xf32>
    %182 = arith.mulf %176, %181 : vector<8x32xf32>
    %183 = arith.truncf %182 : vector<8x32xf32> to vector<8x32xbf16>
    %cst_36 = arith.constant dense<0.000000e+00> : vector<8x256xf32>
    %184 = tpu.matmul %183, %7, %cst_36 {dimension_numbers = #tpu.dot_dimension_numbers<[1], [0], [0], [1], [0, 0, 1, 1], [], []>} : vector<8x32xbf16>, vector<32x256xbf16>, vector<8x256xf32> -> vector<8x256xf32>
    %185 = vector.extract_strided_slice %184 {offsets = [0, 0], sizes = [8, 128], strides = [1, 1]} : vector<8x256xf32> to vector<8x128xf32>
    %186 = vector.extract_strided_slice %184 {offsets = [0, 128], sizes = [8, 128], strides = [1, 1]} : vector<8x256xf32> to vector<8x128xf32>
    %187 = vector.broadcast %9 : vector<1x128xf32> to vector<8x128xf32>
    %188 = arith.addf %186, %187 : vector<8x128xf32>
    %189 = arith.addf %188, %165 : vector<8x128xf32>
    %190 = arith.negf %189 : vector<8x128xf32>
    %191 = math.exp %190 : vector<8x128xf32>
    %cst_37 = arith.constant 1.000000e+00 : f32
    %192 = vector.broadcast %cst_37 : f32 to vector<8x128xf32>
    %193 = arith.addf %192, %191 : vector<8x128xf32>
    %194 = arith.divf %192, %193 : vector<8x128xf32>
    %195 = math.tanh %189 : vector<8x128xf32>
    %196 = vector.extract_strided_slice %194 {offsets = [0, 0], sizes = [8, 32], strides = [1, 1]} : vector<8x128xf32> to vector<8x32xf32>
    %197 = vector.extract_strided_slice %194 {offsets = [0, 32], sizes = [8, 32], strides = [1, 1]} : vector<8x128xf32> to vector<8x32xf32>
    %198 = vector.extract_strided_slice %194 {offsets = [0, 96], sizes = [8, 32], strides = [1, 1]} : vector<8x128xf32> to vector<8x32xf32>
    %199 = vector.extract_strided_slice %195 {offsets = [0, 64], sizes = [8, 32], strides = [1, 1]} : vector<8x128xf32> to vector<8x32xf32>
    %200 = arith.mulf %197, %161 : vector<8x32xf32>
    %201 = arith.mulf %196, %199 : vector<8x32xf32>
    %202 = arith.addf %200, %201 : vector<8x32xf32>
    %203 = math.tanh %202 : vector<8x32xf32>
    %204 = arith.mulf %198, %203 : vector<8x32xf32>
    %205 = arith.truncf %204 : vector<8x32xf32> to vector<8x32xbf16>
    %cst_38 = arith.constant dense<0.000000e+00> : vector<8x128xf32>
    %206 = tpu.matmul %205, %8, %cst_38 {dimension_numbers = #tpu.dot_dimension_numbers<[1], [0], [0], [1], [0, 0, 1, 1], [], []>} : vector<8x32xbf16>, vector<32x128xbf16>, vector<8x128xf32> -> vector<8x128xf32>
    %c40 = arith.constant 40 : index
    %c0_39 = arith.constant 0 : index
    %207 = vector.load %arg9[%c40, %c0_39] : memref<64x128xf32, #tpu.memory_space<vmem>>, vector<8x128xf32>
    %208 = arith.addf %207, %185 : vector<8x128xf32>
    %209 = arith.negf %208 : vector<8x128xf32>
    %210 = math.exp %209 : vector<8x128xf32>
    %cst_40 = arith.constant 1.000000e+00 : f32
    %211 = vector.broadcast %cst_40 : f32 to vector<8x128xf32>
    %212 = arith.addf %211, %210 : vector<8x128xf32>
    %213 = arith.divf %211, %212 : vector<8x128xf32>
    %214 = math.tanh %208 : vector<8x128xf32>
    %215 = vector.extract_strided_slice %213 {offsets = [0, 0], sizes = [8, 32], strides = [1, 1]} : vector<8x128xf32> to vector<8x32xf32>
    %216 = vector.extract_strided_slice %213 {offsets = [0, 32], sizes = [8, 32], strides = [1, 1]} : vector<8x128xf32> to vector<8x32xf32>
    %217 = vector.extract_strided_slice %213 {offsets = [0, 96], sizes = [8, 32], strides = [1, 1]} : vector<8x128xf32> to vector<8x32xf32>
    %218 = vector.extract_strided_slice %214 {offsets = [0, 64], sizes = [8, 32], strides = [1, 1]} : vector<8x128xf32> to vector<8x32xf32>
    %219 = arith.mulf %216, %180 : vector<8x32xf32>
    %220 = arith.mulf %215, %218 : vector<8x32xf32>
    %221 = arith.addf %219, %220 : vector<8x32xf32>
    %222 = math.tanh %221 : vector<8x32xf32>
    %223 = arith.mulf %217, %222 : vector<8x32xf32>
    %224 = arith.truncf %223 : vector<8x32xf32> to vector<8x32xbf16>
    %cst_41 = arith.constant dense<0.000000e+00> : vector<8x256xf32>
    %225 = tpu.matmul %224, %7, %cst_41 {dimension_numbers = #tpu.dot_dimension_numbers<[1], [0], [0], [1], [0, 0, 1, 1], [], []>} : vector<8x32xbf16>, vector<32x256xbf16>, vector<8x256xf32> -> vector<8x256xf32>
    %226 = vector.extract_strided_slice %225 {offsets = [0, 0], sizes = [8, 128], strides = [1, 1]} : vector<8x256xf32> to vector<8x128xf32>
    %227 = vector.extract_strided_slice %225 {offsets = [0, 128], sizes = [8, 128], strides = [1, 1]} : vector<8x256xf32> to vector<8x128xf32>
    %228 = vector.broadcast %9 : vector<1x128xf32> to vector<8x128xf32>
    %229 = arith.addf %227, %228 : vector<8x128xf32>
    %230 = arith.addf %229, %206 : vector<8x128xf32>
    %231 = arith.negf %230 : vector<8x128xf32>
    %232 = math.exp %231 : vector<8x128xf32>
    %cst_42 = arith.constant 1.000000e+00 : f32
    %233 = vector.broadcast %cst_42 : f32 to vector<8x128xf32>
    %234 = arith.addf %233, %232 : vector<8x128xf32>
    %235 = arith.divf %233, %234 : vector<8x128xf32>
    %236 = math.tanh %230 : vector<8x128xf32>
    %237 = vector.extract_strided_slice %235 {offsets = [0, 0], sizes = [8, 32], strides = [1, 1]} : vector<8x128xf32> to vector<8x32xf32>
    %238 = vector.extract_strided_slice %235 {offsets = [0, 32], sizes = [8, 32], strides = [1, 1]} : vector<8x128xf32> to vector<8x32xf32>
    %239 = vector.extract_strided_slice %235 {offsets = [0, 96], sizes = [8, 32], strides = [1, 1]} : vector<8x128xf32> to vector<8x32xf32>
    %240 = vector.extract_strided_slice %236 {offsets = [0, 64], sizes = [8, 32], strides = [1, 1]} : vector<8x128xf32> to vector<8x32xf32>
    %241 = arith.mulf %238, %202 : vector<8x32xf32>
    %242 = arith.mulf %237, %240 : vector<8x32xf32>
    %243 = arith.addf %241, %242 : vector<8x32xf32>
    %244 = math.tanh %243 : vector<8x32xf32>
    %245 = arith.mulf %239, %244 : vector<8x32xf32>
    %246 = arith.truncf %245 : vector<8x32xf32> to vector<8x32xbf16>
    %cst_43 = arith.constant dense<0.000000e+00> : vector<8x128xf32>
    %247 = tpu.matmul %246, %8, %cst_43 {dimension_numbers = #tpu.dot_dimension_numbers<[1], [0], [0], [1], [0, 0, 1, 1], [], []>} : vector<8x32xbf16>, vector<32x128xbf16>, vector<8x128xf32> -> vector<8x128xf32>
    %c48 = arith.constant 48 : index
    %c0_44 = arith.constant 0 : index
    %248 = vector.load %arg9[%c48, %c0_44] : memref<64x128xf32, #tpu.memory_space<vmem>>, vector<8x128xf32>
    %249 = arith.addf %248, %226 : vector<8x128xf32>
    %250 = arith.negf %249 : vector<8x128xf32>
    %251 = math.exp %250 : vector<8x128xf32>
    %cst_45 = arith.constant 1.000000e+00 : f32
    %252 = vector.broadcast %cst_45 : f32 to vector<8x128xf32>
    %253 = arith.addf %252, %251 : vector<8x128xf32>
    %254 = arith.divf %252, %253 : vector<8x128xf32>
    %255 = math.tanh %249 : vector<8x128xf32>
    %256 = vector.extract_strided_slice %254 {offsets = [0, 0], sizes = [8, 32], strides = [1, 1]} : vector<8x128xf32> to vector<8x32xf32>
    %257 = vector.extract_strided_slice %254 {offsets = [0, 32], sizes = [8, 32], strides = [1, 1]} : vector<8x128xf32> to vector<8x32xf32>
    %258 = vector.extract_strided_slice %254 {offsets = [0, 96], sizes = [8, 32], strides = [1, 1]} : vector<8x128xf32> to vector<8x32xf32>
    %259 = vector.extract_strided_slice %255 {offsets = [0, 64], sizes = [8, 32], strides = [1, 1]} : vector<8x128xf32> to vector<8x32xf32>
    %260 = arith.mulf %257, %221 : vector<8x32xf32>
    %261 = arith.mulf %256, %259 : vector<8x32xf32>
    %262 = arith.addf %260, %261 : vector<8x32xf32>
    %263 = math.tanh %262 : vector<8x32xf32>
    %264 = arith.mulf %258, %263 : vector<8x32xf32>
    %265 = arith.truncf %264 : vector<8x32xf32> to vector<8x32xbf16>
    %cst_46 = arith.constant dense<0.000000e+00> : vector<8x256xf32>
    %266 = tpu.matmul %265, %7, %cst_46 {dimension_numbers = #tpu.dot_dimension_numbers<[1], [0], [0], [1], [0, 0, 1, 1], [], []>} : vector<8x32xbf16>, vector<32x256xbf16>, vector<8x256xf32> -> vector<8x256xf32>
    %267 = vector.extract_strided_slice %266 {offsets = [0, 0], sizes = [8, 128], strides = [1, 1]} : vector<8x256xf32> to vector<8x128xf32>
    %268 = vector.extract_strided_slice %266 {offsets = [0, 128], sizes = [8, 128], strides = [1, 1]} : vector<8x256xf32> to vector<8x128xf32>
    %269 = vector.broadcast %9 : vector<1x128xf32> to vector<8x128xf32>
    %270 = arith.addf %268, %269 : vector<8x128xf32>
    %271 = arith.addf %270, %247 : vector<8x128xf32>
    %272 = arith.negf %271 : vector<8x128xf32>
    %273 = math.exp %272 : vector<8x128xf32>
    %cst_47 = arith.constant 1.000000e+00 : f32
    %274 = vector.broadcast %cst_47 : f32 to vector<8x128xf32>
    %275 = arith.addf %274, %273 : vector<8x128xf32>
    %276 = arith.divf %274, %275 : vector<8x128xf32>
    %277 = math.tanh %271 : vector<8x128xf32>
    %278 = vector.extract_strided_slice %276 {offsets = [0, 0], sizes = [8, 32], strides = [1, 1]} : vector<8x128xf32> to vector<8x32xf32>
    %279 = vector.extract_strided_slice %276 {offsets = [0, 32], sizes = [8, 32], strides = [1, 1]} : vector<8x128xf32> to vector<8x32xf32>
    %280 = vector.extract_strided_slice %276 {offsets = [0, 96], sizes = [8, 32], strides = [1, 1]} : vector<8x128xf32> to vector<8x32xf32>
    %281 = vector.extract_strided_slice %277 {offsets = [0, 64], sizes = [8, 32], strides = [1, 1]} : vector<8x128xf32> to vector<8x32xf32>
    %282 = arith.mulf %279, %243 : vector<8x32xf32>
    %283 = arith.mulf %278, %281 : vector<8x32xf32>
    %284 = arith.addf %282, %283 : vector<8x32xf32>
    %285 = math.tanh %284 : vector<8x32xf32>
    %286 = arith.mulf %280, %285 : vector<8x32xf32>
    %287 = arith.truncf %286 : vector<8x32xf32> to vector<8x32xbf16>
    %cst_48 = arith.constant dense<0.000000e+00> : vector<8x128xf32>
    %288 = tpu.matmul %287, %8, %cst_48 {dimension_numbers = #tpu.dot_dimension_numbers<[1], [0], [0], [1], [0, 0, 1, 1], [], []>} : vector<8x32xbf16>, vector<32x128xbf16>, vector<8x128xf32> -> vector<8x128xf32>
    %c56 = arith.constant 56 : index
    %c0_49 = arith.constant 0 : index
    %289 = vector.load %arg9[%c56, %c0_49] : memref<64x128xf32, #tpu.memory_space<vmem>>, vector<8x128xf32>
    %290 = arith.addf %289, %267 : vector<8x128xf32>
    %291 = arith.negf %290 : vector<8x128xf32>
    %292 = math.exp %291 : vector<8x128xf32>
    %cst_50 = arith.constant 1.000000e+00 : f32
    %293 = vector.broadcast %cst_50 : f32 to vector<8x128xf32>
    %294 = arith.addf %293, %292 : vector<8x128xf32>
    %295 = arith.divf %293, %294 : vector<8x128xf32>
    %296 = math.tanh %290 : vector<8x128xf32>
    %297 = vector.extract_strided_slice %295 {offsets = [0, 0], sizes = [8, 32], strides = [1, 1]} : vector<8x128xf32> to vector<8x32xf32>
    %298 = vector.extract_strided_slice %295 {offsets = [0, 32], sizes = [8, 32], strides = [1, 1]} : vector<8x128xf32> to vector<8x32xf32>
    %299 = vector.extract_strided_slice %295 {offsets = [0, 96], sizes = [8, 32], strides = [1, 1]} : vector<8x128xf32> to vector<8x32xf32>
    %300 = vector.extract_strided_slice %296 {offsets = [0, 64], sizes = [8, 32], strides = [1, 1]} : vector<8x128xf32> to vector<8x32xf32>
    %301 = arith.mulf %298, %262 : vector<8x32xf32>
    %302 = arith.mulf %297, %300 : vector<8x32xf32>
    %303 = arith.addf %301, %302 : vector<8x32xf32>
    %304 = math.tanh %303 : vector<8x32xf32>
    %305 = arith.mulf %299, %304 : vector<8x32xf32>
    %306 = arith.truncf %305 : vector<8x32xf32> to vector<8x32xbf16>
    %cst_51 = arith.constant dense<0.000000e+00> : vector<8x256xf32>
    %307 = tpu.matmul %306, %7, %cst_51 {dimension_numbers = #tpu.dot_dimension_numbers<[1], [0], [0], [1], [0, 0, 1, 1], [], []>} : vector<8x32xbf16>, vector<32x256xbf16>, vector<8x256xf32> -> vector<8x256xf32>
    %308 = vector.extract_strided_slice %307 {offsets = [0, 128], sizes = [8, 128], strides = [1, 1]} : vector<8x256xf32> to vector<8x128xf32>
    %309 = vector.broadcast %9 : vector<1x128xf32> to vector<8x128xf32>
    %310 = arith.addf %308, %309 : vector<8x128xf32>
    %311 = arith.addf %310, %288 : vector<8x128xf32>
    %312 = arith.negf %311 : vector<8x128xf32>
    %313 = math.exp %312 : vector<8x128xf32>
    %cst_52 = arith.constant 1.000000e+00 : f32
    %314 = vector.broadcast %cst_52 : f32 to vector<8x128xf32>
    %315 = arith.addf %314, %313 : vector<8x128xf32>
    %316 = arith.divf %314, %315 : vector<8x128xf32>
    %317 = math.tanh %311 : vector<8x128xf32>
    %318 = vector.extract_strided_slice %316 {offsets = [0, 0], sizes = [8, 32], strides = [1, 1]} : vector<8x128xf32> to vector<8x32xf32>
    %319 = vector.extract_strided_slice %316 {offsets = [0, 32], sizes = [8, 32], strides = [1, 1]} : vector<8x128xf32> to vector<8x32xf32>
    %320 = vector.extract_strided_slice %316 {offsets = [0, 96], sizes = [8, 32], strides = [1, 1]} : vector<8x128xf32> to vector<8x32xf32>
    %321 = vector.extract_strided_slice %317 {offsets = [0, 64], sizes = [8, 32], strides = [1, 1]} : vector<8x128xf32> to vector<8x32xf32>
    %322 = arith.mulf %319, %284 : vector<8x32xf32>
    %323 = arith.mulf %318, %321 : vector<8x32xf32>
    %324 = arith.addf %322, %323 : vector<8x32xf32>
    %325 = math.tanh %324 : vector<8x32xf32>
    %326 = arith.mulf %320, %325 : vector<8x32xf32>
    %327 = arith.truncf %326 : vector<8x32xf32> to vector<8x32xbf16>
    %c0_53 = arith.constant 0 : index
    %c0_54 = arith.constant 0 : index
    %328 = vector.load %arg7[%c0_53, %c0_54] : memref<32x16xbf16, #tpu.memory_space<vmem>>, vector<32x16xbf16>
    %cst_55 = arith.constant dense<0.000000e+00> : vector<8x16xf32>
    %329 = tpu.matmul %327, %328, %cst_55 {dimension_numbers = #tpu.dot_dimension_numbers<[1], [0], [0], [1], [0, 0, 1, 1], [], []>} : vector<8x32xbf16>, vector<32x16xbf16>, vector<8x16xf32> -> vector<8x16xf32>
    %c0_56 = arith.constant 0 : index
    %c0_57 = arith.constant 0 : index
    %330 = vector.load %arg1[%c0_56, %c0_57] : memref<8x16xf32, #tpu.memory_space<vmem>>, vector<8x16xf32>
    %331 = arith.addf %329, %330 : vector<8x16xf32>
    %c0_58 = arith.constant 0 : index
    %c0_59 = arith.constant 0 : index
    %332 = vector.load %arg8[%c0_58, %c0_59] : memref<8x16xf32, #tpu.memory_space<vmem>>, vector<8x16xf32>
    tpu.vector_store %arg8[%c0_58, %c0_59], %331 {strides = array<i32>} : memref<8x16xf32, #tpu.memory_space<vmem>>, vector<8x16xf32>,
    return
  }
}

</mosaic_0001>

<llo_original>
// kernel: embed_rnn_forward.1
$region0: #{embed_rnn_forward.1}
  #allocation0 [shape = 'u32[]', space=smem, size = 0x4, offset = 0x4, fixed_abs, tag = 'smem constant byte address 0x4 - core index']
  #allocation1 [shape = 'u32[144,128]{1,0:T(1,128)}', space=vmem, size = 0x12000, scoped, tag = 'internal scratch']
  #allocation2 [shape = 'f32[64,128]{1,0:T(8,128)}', space=vmem, size = 0x8000, scoped, tag = 'scratch operand']
  %s0 = inlined_call_operand.vmem [shape: bf16[64,16], index: 0, kind: input, shape index: {}]
  %s1 = inlined_call_operand.vmem [shape: f32[8,16], index: 1, kind: input, shape index: {}]
  %s2 = inlined_call_operand.vmem [shape: bf16[16,128], index: 2, kind: input, shape index: {}]
  %s3 = inlined_call_operand.vmem [shape: f32[1,128], index: 3, kind: input, shape index: {}]
  %s4 = inlined_call_operand.vmem [shape: bf16[32,256], index: 4, kind: input, shape index: {}]
  %s5 = inlined_call_operand.vmem [shape: bf16[32,128], index: 5, kind: input, shape index: {}]
  %s6 = inlined_call_operand.vmem [shape: f32[1,128], index: 6, kind: input, shape index: {}]
  %s7 = inlined_call_operand.vmem [shape: bf16[32,16], index: 7, kind: input, shape index: {}]
  %s8 = inlined_call_operand.vmem [shape: f32[8,16], index: 8, kind: output, shape index: {}]
  %s9 = sld [smem:[#allocation0]]
  $region42: #{embed_rnn_forward.1} parent=0
    _
  %s11 = ssub.s32 1, %s9
  %s12 = scalar_select 0, %s11, %s9
  // Predicated region
  $region2: #{embed_rnn_forward.1} parent=0 // pred_check
    _
  $region3: #{embed_rnn_forward.1} parent=0 // pred_check_branch
    %14 = sbr.rel (0) target = $region5
  $region4: #{embed_rnn_forward.1} parent=0 // pred_region
    _
  $region5: #{embed_rnn_forward.1} parent=0 // pred_fallthru
    _
  // Predicated region
  $region6: #{embed_rnn_forward.1} parent=0 // pred_check
    _
  $region7: #{embed_rnn_forward.1} parent=0 // pred_check_branch
    %16 = sbr.rel (0) target = $region9
  $region8: #{embed_rnn_forward.1} parent=0 // pred_region
    _
  $region9: #{embed_rnn_forward.1} parent=0 // pred_fallthru
    _
  // Predicated region
  $region10: #{embed_rnn_forward.1} parent=0 // pred_check
    _
  $region11: #{embed_rnn_forward.1} parent=0 // pred_check_branch
    %18 = sbr.rel (0) target = $region13
  $region12: #{embed_rnn_forward.1} parent=0 // pred_region
    _
  $region13: #{embed_rnn_forward.1} parent=0 // pred_fallthru
    _
  // Predicated region
  $region14: #{embed_rnn_forward.1} parent=0 // pred_check
    _
  $region15: #{embed_rnn_forward.1} parent=0 // pred_check_branch
    %20 = sbr.rel (0) target = $region17
  $region16: #{embed_rnn_forward.1} parent=0 // pred_region
    _
  $region17: #{embed_rnn_forward.1} parent=0 // pred_fallthru
    _
  // Predicated region
  $region18: #{embed_rnn_forward.1} parent=0 // pred_check
    _
  $region19: #{embed_rnn_forward.1} parent=0 // pred_check_branch
    %22 = sbr.rel (0) target = $region21
  $region20: #{embed_rnn_forward.1} parent=0 // pred_region
    _
  $region21: #{embed_rnn_forward.1} parent=0 // pred_fallthru
    _
  // Predicated region
  $region22: #{embed_rnn_forward.1} parent=0 // pred_check
    _
  $region23: #{embed_rnn_forward.1} parent=0 // pred_check_branch
    %24 = sbr.rel (0) target = $region25
  $region24: #{embed_rnn_forward.1} parent=0 // pred_region
    _
  $region25: #{embed_rnn_forward.1} parent=0 // pred_fallthru
    _
  // Predicated region
  $region26: #{embed_rnn_forward.1} parent=0 // pred_check
    _
  $region27: #{embed_rnn_forward.1} parent=0 // pred_check_branch
    %26 = sbr.rel (0) target = $region29
  $region28: #{embed_rnn_forward.1} parent=0 // pred_region
    _
  $region29: #{embed_rnn_forward.1} parent=0 // pred_fallthru
    _
  // Predicated region
  $region30: #{embed_rnn_forward.1} parent=0 // pred_check
    _
  $region31: #{embed_rnn_forward.1} parent=0 // pred_check_branch
    %28 = sbr.rel (0) target = $region33
  $region32: #{embed_rnn_forward.1} parent=0 // pred_region
    _
  $region33: #{embed_rnn_forward.1} parent=0 // pred_fallthru
    _
  %v30 = vld [vmem:[%s0] sm:$0xf]
  %v31 = vld [vmem:[%s0 + $0x4] sm:$0xf]
  %v32 = vld [vmem:[%s0 + $0x8] sm:$0xf]
  %v33 = vld [vmem:[%s0 + $0xc] sm:$0xf]
  %v34 = vld [vmem:[%s0 + $0x10] sm:$0xf]
  %v35 = vld [vmem:[%s0 + $0x14] sm:$0xf]
  %v36 = vld [vmem:[%s0 + $0x18] sm:$0xf]
  %v37 = vld [vmem:[%s0 + $0x1c] sm:$0xf]
  %v38 = vld [vmem:[%s2] sm:$0xf]
  %v39 = vld [vmem:[%s2 + $0x4] sm:$0xf]
  %v40 = vld [vmem:[%s3] sm:$0x1]
  %v42 = vlaneseq
  %v43 = vshrl.u32 %v42, 7
  %v44 = vsub.s32 0, %v43
  %v45 = vrot.slane %v40, %v44
  %v55 = vunpack.c.l.b16 %v30
  %v56 = vunpack.c.l.b16 %v31
  %v57 = vunpack.c.l.b16 %v32
  %v58 = vunpack.c.l.b16 %v33
  %v59 = vunpack.c.l.b16 %v34
  %v60 = vunpack.c.l.b16 %v35
  %v61 = vunpack.c.l.b16 %v36
  %v62 = vunpack.c.l.b16 %v37
  %v63 = vpack.c.b16 %v56, %v55
  %v64 = vpack.c.b16 %v58, %v57
  %v65 = vpack.c.b16 %v60, %v59
  %v66 = vpack.c.b16 %v62, %v61
  %v69 = vunpack.c.l.b16 %v38
  %v70 = vunpack.c.l.b16 %v39
  %v71 = vpack.c.b16 %v70, %v69
  %vm73 = vcmask 130048
  %v75 = vsel %vm73, %v63, 0
  %v78 = vsel %vm73, %v64, 0
  %v81 = vsel %vm73, %v65, 0
  %v84 = vsel %vm73, %v66, 0
  %86 = vmatprep.subr.bf16.mxu0 0
  %87 = vmatpush1.bf16.msra.mxu0 %v71
  %88 = vmatprep.subr.bf16.mxu0 0
  %89 = vmatpush1.bf16.msra.mxu0 0
  %90 = vmatprep.subr.bf16.mxu0 0
  %91 = vmatpush1.bf16.msra.mxu0 0
  %92 = vmatprep.subr.bf16.mxu0 0
  %93 = vmatpush1.bf16.msra.mxu0 0
  %94 = vmatprep.subr.bf16.mxu0 0
  %95 = vmatpush1.bf16.msra.mxu0 0
  %96 = vmatprep.subr.bf16.mxu0 0
  %97 = vmatpush1.bf16.msra.mxu0 0
  %98 = vmatprep.subr.bf16.mxu0 0
  %99 = vmatpush1.bf16.msra.mxu0 0
  %100 = vmatprep.subr.bf16.mxu0 0
  %101 = vmatpush1.bf16.msra.mxu0 0
  %102 = vmatprep.subr.bf16.mxu0 0
  %103 = vmatpush1.bf16.msra.mxu0 0
  %104 = vmatprep.subr.bf16.mxu0 0
  %105 = vmatpush1.bf16.msra.mxu0 0
  %106 = vmatprep.subr.bf16.mxu0 0
  %107 = vmatpush1.bf16.msra.mxu0 0
  %108 = vmatprep.subr.bf16.mxu0 0
  %109 = vmatpush1.bf16.msra.mxu0 0
  %110 = vmatprep.subr.bf16.mxu0 0
  %111 = vmatpush1.bf16.msra.mxu0 0
  %112 = vmatprep.subr.bf16.mxu0 0
  %113 = vmatpush1.bf16.msra.mxu0 0
  %114 = vmatprep.subr.bf16.mxu0 0
  %115 = vmatpush1.bf16.msra.mxu0 0
  %116 = vmatprep.subr.bf16.mxu0 0
  %117 = vmatpush1.bf16.msra.mxu0 0
  %118 = vmatprep.mubr.bf16.mxu0 0
  %119 = vmatmul.mubr.bf16.gmra.mrb[0].mxu0 %v75
  %v120 = vpop.f32.mrb[0].mxu0
  %v121 = vadd.f32 %v45, %v120
  %v122 = vpop.f32.mrb[0].mxu0
  %v123 = vpop.f32.mrb[0].mxu0
  %v124 = vadd.f32 %v45, %v123
  %v125 = vpop.f32.mrb[0].mxu0
  %126 = vmatprep.mubr.bf16.mxu0 0
  %127 = vmatmul.mubr.bf16.gmra.mrb[0].mxu0 %v78
  %v128 = vpop.f32.mrb[0].mxu0
  %v129 = vadd.f32 %v45, %v128
  %v130 = vpop.f32.mrb[0].mxu0
  %v131 = vpop.f32.mrb[0].mxu0
  %v132 = vadd.f32 %v45, %v131
  %v133 = vpop.f32.mrb[0].mxu0
  %134 = vmatprep.mubr.bf16.mxu0 0
  %135 = vmatmul.mubr.bf16.gmra.mrb[0].mxu0 %v81
  %v136 = vpop.f32.mrb[0].mxu0
  %v137 = vadd.f32 %v45, %v136
  %v138 = vpop.f32.mrb[0].mxu0
  %v139 = vpop.f32.mrb[0].mxu0
  %v140 = vadd.f32 %v45, %v139
  %v141 = vpop.f32.mrb[0].mxu0
  %142 = vmatprep.mubr.bf16.mxu0 0
  %143 = vmatmul.mubr.bf16.gmra.mrb[0].mxu0 %v84
  %v144 = vpop.f32.mrb[0].mxu0
  %v145 = vadd.f32 %v45, %v144
  %v146 = vpop.f32.mrb[0].mxu0
  %v147 = vpop.f32.mrb[0].mxu0
  %v148 = vadd.f32 %v45, %v147
  %v149 = vpop.f32.mrb[0].mxu0
  %150 = vdwg.mxu0
  %151 = vst [vmem:[#allocation2] sm:$0xff] %v121
  %152 = vst [vmem:[#allocation2 + $0x8] sm:$0xff] %v124
  %153 = vst [vmem:[#allocation2 + $0x10] sm:$0xff] %v129
  %154 = vst [vmem:[#allocation2 + $0x18] sm:$0xff] %v132
  %155 = vst [vmem:[#allocation2 + $0x20] sm:$0xff] %v137
  %156 = vst [vmem:[#allocation2 + $0x28] sm:$0xff] %v140
  %157 = vst [vmem:[#allocation2 + $0x30] sm:$0xff] %v145
  %158 = vst [vmem:[#allocation2 + $0x38] sm:$0xff] %v148
  %v159 = vld [vmem:[%s4] sm:$0xff]
  %v160 = vld [vmem:[%s4 + $0x8] sm:$0xff]
  %v161 = vld [vmem:[%s4 + $0x10] sm:$0xff]
  %v162 = vld [vmem:[%s4 + $0x18] sm:$0xff]
  %v163 = vld [vmem:[%s5] sm:$0xf]
  %v164 = vld [vmem:[%s5 + $0x4] sm:$0xf]
  %v165 = vld [vmem:[%s5 + $0x8] sm:$0xf]
  %v166 = vld [vmem:[%s5 + $0xc] sm:$0xf]
  %v167 = vld [vmem:[%s6] sm:$0x1]
  %v168 = vld [vmem:[#allocation2] sm:$0xff]
  %v169 = vxor.u32 %v168, 2147483648
  %v170 = vmul.f32 %v169, 1.442695
  %v171 = vpow.pop %v170
  %v172 = vadd.f32 %v171, 1.0
  %v173 = vrcp.pop %v172
  %v174 = vmul.f32 1.0, %v173
  %v175 = vtanh.pop %v168
  %177 = vrot.lane.b32.xlu0 %v175, 64
  %v178 = vpop.permute.xlu0 %177
  %v180 = vmul.f32 %v174, %v178
  %v181 = vtanh.pop %v180
  %183 = vrot.lane.b32.xlu0 %v181, 96
  %v184 = vpop.permute.xlu0 %183
  %v186 = vmul.f32 %v174, %v184
  %v187 = vpack.c.bf16 %v186, %v186
  %189 = vrot.lane.b32.xlu0 %v187, 32
  %v190 = vpop.permute.xlu0 %189
  %v195 = vunpack.c.l.b16 %v159
  %v196 = vunpack.c.h.b16 %v159
  %v197 = vunpack.c.l.b16 %v160
  %v198 = vunpack.c.h.b16 %v160
  %v199 = vunpack.c.l.b16 %v161
  %v200 = vunpack.c.h.b16 %v161
  %v201 = vunpack.c.l.b16 %v162
  %v202 = vunpack.c.h.b16 %v162
  %v203 = vpack.c.b16 %v197, %v195
  %v204 = vpack.c.b16 %v198, %v196
  %v205 = vpack.c.b16 %v201, %v199
  %v206 = vpack.c.b16 %v202, %v200
  %vm211 = vcmask 261120
  %v213 = vsel %vm211, %v190, 0
  %215 = vmatprep.subr.bf16.mxu0 %v204
  %216 = vmatpush1.bf16.msra.mxu0 %v203
  %217 = vmatprep.subr.bf16.mxu0 %v206
  %218 = vmatpush1.bf16.msra.mxu0 %v205
  %219 = vmatprep.subr.bf16.mxu0 0
  %220 = vmatpush1.bf16.msra.mxu0 0
  %221 = vmatprep.subr.bf16.mxu0 0
  %222 = vmatpush1.bf16.msra.mxu0 0
  %223 = vmatprep.subr.bf16.mxu0 0
  %224 = vmatpush1.bf16.msra.mxu0 0
  %225 = vmatprep.subr.bf16.mxu0 0
  %226 = vmatpush1.bf16.msra.mxu0 0
  %227 = vmatprep.subr.bf16.mxu0 0
  %228 = vmatpush1.bf16.msra.mxu0 0
  %229 = vmatprep.subr.bf16.mxu0 0
  %230 = vmatpush1.bf16.msra.mxu0 0
  %231 = vmatprep.subr.bf16.mxu0 0
  %232 = vmatpush1.bf16.msra.mxu0 0
  %233 = vmatprep.subr.bf16.mxu0 0
  %234 = vmatpush1.bf16.msra.mxu0 0
  %235 = vmatprep.subr.bf16.mxu0 0
  %236 = vmatpush1.bf16.msra.mxu0 0
  %237 = vmatprep.subr.bf16.mxu0 0
  %238 = vmatpush1.bf16.msra.mxu0 0
  %239 = vmatprep.subr.bf16.mxu0 0
  %240 = vmatpush1.bf16.msra.mxu0 0
  %241 = vmatprep.subr.bf16.mxu0 0
  %242 = vmatpush1.bf16.msra.mxu0 0
  %243 = vmatprep.subr.bf16.mxu0 0
  %244 = vmatpush1.bf16.msra.mxu0 0
  %245 = vmatprep.subr.bf16.mxu0 0
  %246 = vmatpush1.bf16.msra.mxu0 0
  %247 = vmatprep.mubr.bf16.mxu0 0
  %248 = vmatmul.mubr.bf16.gmra.mrb[0].mxu0 %v213
  %v249 = vpop.f32.mrb[0].mxu0
  %v250 = vadd.f32 0.0, %v249
  %v251 = vpop.f32.mrb[0].mxu0
  %v252 = vadd.f32 0.0, %v251
  %v253 = vpop.f32.mrb[0].mxu0
  %v254 = vpop.f32.mrb[0].mxu0
  %255 = vdwg.mxu0
  %v257 = vlaneseq
  %v258 = vshrl.u32 %v257, 7
  %v259 = vsub.s32 0, %v258
  %v260 = vrot.slane %v167, %v259
  %v262 = vadd.f32 %v252, %v260
  %v263 = vxor.u32 %v262, 2147483648
  %v264 = vmul.f32 %v263, 1.442695
  %v265 = vpow.pop %v264
  %v266 = vadd.f32 %v265, 1.0
  %v267 = vrcp.pop %v266
  %v268 = vmul.f32 1.0, %v267
  %v269 = vtanh.pop %v262
  %271 = vrot.lane.b32.xlu0 %v269, 64
  %v272 = vpop.permute.xlu0 %271
  %v274 = vmul.f32 %v268, %v272
  %v275 = vtanh.pop %v274
  %277 = vrot.lane.b32.xlu0 %v275, 96
  %v278 = vpop.permute.xlu0 %277
  %v280 = vmul.f32 %v268, %v278
  %v281 = vpack.c.bf16 %v280, %v280
  %283 = vrot.lane.b32.xlu0 %v281, 32
  %v284 = vpop.permute.xlu0 %283
  %v289 = vunpack.c.l.b16 %v163
  %v290 = vunpack.c.l.b16 %v164
  %v291 = vunpack.c.l.b16 %v165
  %v292 = vunpack.c.l.b16 %v166
  %v293 = vpack.c.b16 %v290, %v289
  %v294 = vpack.c.b16 %v292, %v291
  %v298 = vsel %vm211, %v284, 0
  %300 = vmatprep.subr.bf16.mxu0 0
  %301 = vmatpush1.bf16.msra.mxu0 %v293
  %302 = vmatprep.subr.bf16.mxu0 0
  %303 = vmatpush1.bf16.msra.mxu0 %v294
  %304 = vmatprep.subr.bf16.mxu0 0
  %305 = vmatpush1.bf16.msra.mxu0 0
  %306 = vmatprep.subr.bf16.mxu0 0
  %307 = vmatpush1.bf16.msra.mxu0 0
  %308 = vmatprep.subr.bf16.mxu0 0
  %309 = vmatpush1.bf16.msra.mxu0 0
  %310 = vmatprep.subr.bf16.mxu0 0
  %311 = vmatpush1.bf16.msra.mxu0 0
  %312 = vmatprep.subr.bf16.mxu0 0
  %313 = vmatpush1.bf16.msra.mxu0 0
  %314 = vmatprep.subr.bf16.mxu0 0
  %315 = vmatpush1.bf16.msra.mxu0 0
  %316 = vmatprep.subr.bf16.mxu0 0
  %317 = vmatpush1.bf16.msra.mxu0 0
  %318 = vmatprep.subr.bf16.mxu0 0
  %319 = vmatpush1.bf16.msra.mxu0 0
  %320 = vmatprep.subr.bf16.mxu0 0
  %321 = vmatpush1.bf16.msra.mxu0 0
  %322 = vmatprep.subr.bf16.mxu0 0
  %323 = vmatpush1.bf16.msra.mxu0 0
  %324 = vmatprep.subr.bf16.mxu0 0
  %325 = vmatpush1.bf16.msra.mxu0 0
  %326 = vmatprep.subr.bf16.mxu0 0
  %327 = vmatpush1.bf16.msra.mxu0 0
  %328 = vmatprep.subr.bf16.mxu0 0
  %329 = vmatpush1.bf16.msra.mxu0 0
  %330 = vmatprep.subr.bf16.mxu0 0
  %331 = vmatpush1.bf16.msra.mxu0 0
  %332 = vmatprep.mubr.bf16.mxu0 0
  %333 = vmatmul.mubr.bf16.gmra.mrb[0].mxu0 %v298
  %v334 = vpop.f32.mrb[0].mxu0
  %v335 = vadd.f32 0.0, %v334
  %v336 = vpop.f32.mrb[0].mxu0
  %v337 = vpop.f32.mrb[0].mxu0
  %v338 = vpop.f32.mrb[0].mxu0
  %339 = vdwg.mxu0
  %v340 = vld [vmem:[#allocation2 + $0x8] sm:$0xff]
  %v341 = vadd.f32 %v340, %v250
  %v342 = vxor.u32 %v341, 2147483648
  %v343 = vmul.f32 %v342, 1.442695
  %v344 = vpow.pop %v343
  %v345 = vadd.f32 %v344, 1.0
  %v346 = vrcp.pop %v345
  %v347 = vmul.f32 1.0, %v346
  %v348 = vtanh.pop %v341
  %350 = vrot.lane.b32.xlu0 %v180, 32
  %v351 = vpop.permute.xlu0 %350
  %v353 = vmul.f32 %v347, %v351
  %355 = vrot.lane.b32.xlu0 %v348, 64
  %v356 = vpop.permute.xlu0 %355
  %v358 = vmul.f32 %v347, %v356
  %360 = vrot.lane.b32.xlu0 %v358, 32
  %v361 = vpop.permute.xlu0 %360
  %v363 = vadd.f32 %v353, %v361
  %v364 = vtanh.pop %v363
  %366 = vrot.lane.b32.xlu0 %v364, 64
  %v367 = vpop.permute.xlu0 %366
  %v369 = vmul.f32 %v347, %v367
  %v370 = vpack.c.bf16 %v369, %v369
  %372 = vrot.lane.b32.xlu0 %v370, 32
  %v373 = vpop.permute.xlu0 %372
  %v375 = vsel %vm211, %v373, 0
  %377 = vmatprep.subr.bf16.mxu0 %v204
  %378 = vmatpush1.bf16.msra.mxu0 %v203
  %379 = vmatprep.subr.bf16.mxu0 %v206
  %380 = vmatpush1.bf16.msra.mxu0 %v205
  %381 = vmatprep.subr.bf16.mxu0 0
  %382 = vmatpush1.bf16.msra.mxu0 0
  %383 = vmatprep.subr.bf16.mxu0 0
  %384 = vmatpush1.bf16.msra.mxu0 0
  %385 = vmatprep.subr.bf16.mxu0 0
  %386 = vmatpush1.bf16.msra.mxu0 0
  %387 = vmatprep.subr.bf16.mxu0 0
  %388 = vmatpush1.bf16.msra.mxu0 0
  %389 = vmatprep.subr.bf16.mxu0 0
  %390 = vmatpush1.bf16.msra.mxu0 0
  %391 = vmatprep.subr.bf16.mxu0 0
  %392 = vmatpush1.bf16.msra.mxu0 0
  %393 = vmatprep.subr.bf16.mxu0 0
  %394 = vmatpush1.bf16.msra.mxu0 0
  %395 = vmatprep.subr.bf16.mxu0 0
  %396 = vmatpush1.bf16.msra.mxu0 0
  %397 = vmatprep.subr.bf16.mxu0 0
  %398 = vmatpush1.bf16.msra.mxu0 0
  %399 = vmatprep.subr.bf16.mxu0 0
  %400 = vmatpush1.bf16.msra.mxu0 0
  %401 = vmatprep.subr.bf16.mxu0 0
  %402 = vmatpush1.bf16.msra.mxu0 0
  %403 = vmatprep.subr.bf16.mxu0 0
  %404 = vmatpush1.bf16.msra.mxu0 0
  %405 = vmatprep.subr.bf16.mxu0 0
  %406 = vmatpush1.bf16.msra.mxu0 0
  %407 = vmatprep.subr.bf16.mxu0 0
  %408 = vmatpush1.bf16.msra.mxu0 0
  %409 = vmatprep.mubr.bf16.mxu0 0
  %410 = vmatmul.mubr.bf16.gmra.mrb[0].mxu0 %v375
  %v411 = vpop.f32.mrb[0].mxu0
  %v412 = vadd.f32 0.0, %v411
  %v413 = vpop.f32.mrb[0].mxu0
  %v414 = vadd.f32 0.0, %v413
  %v415 = vpop.f32.mrb[0].mxu0
  %v416 = vpop.f32.mrb[0].mxu0
  %417 = vdwg.mxu0
  %v418 = vadd.f32 %v414, %v260
  %v419 = vadd.f32 %v418, %v335
  %v420 = vxor.u32 %v419, 2147483648
  %v421 = vmul.f32 %v420, 1.442695
  %v422 = vpow.pop %v421
  %v423 = vadd.f32 %v422, 1.0
  %v424 = vrcp.pop %v423
  %v425 = vmul.f32 1.0, %v424
  %v426 = vtanh.pop %v419
  %428 = vrot.lane.b32.xlu0 %v274, 32
  %v429 = vpop.permute.xlu0 %428
  %v431 = vmul.f32 %v425, %v429
  %433 = vrot.lane.b32.xlu0 %v426, 64
  %v434 = vpop.permute.xlu0 %433
  %v436 = vmul.f32 %v425, %v434
  %438 = vrot.lane.b32.xlu0 %v436, 32
  %v439 = vpop.permute.xlu0 %438
  %v441 = vadd.f32 %v431, %v439
  %v442 = vtanh.pop %v441
  %444 = vrot.lane.b32.xlu0 %v442, 64
  %v445 = vpop.permute.xlu0 %444
  %v447 = vmul.f32 %v425, %v445
  %v448 = vpack.c.bf16 %v447, %v447
  %450 = vrot.lane.b32.xlu0 %v448, 32
  %v451 = vpop.permute.xlu0 %450
  %v453 = vsel %vm211, %v451, 0
  %455 = vmatprep.subr.bf16.mxu0 0
  %456 = vmatpush1.bf16.msra.mxu0 %v293
  %457 = vmatprep.subr.bf16.mxu0 0
  %458 = vmatpush1.bf16.msra.mxu0 %v294
  %459 = vmatprep.subr.bf16.mxu0 0
  %460 = vmatpush1.bf16.msra.mxu0 0
  %461 = vmatprep.subr.bf16.mxu0 0
  %462 = vmatpush1.bf16.msra.mxu0 0
  %463 = vmatprep.subr.bf16.mxu0 0
  %464 = vmatpush1.bf16.msra.mxu0 0
  %465 = vmatprep.subr.bf16.mxu0 0
  %466 = vmatpush1.bf16.msra.mxu0 0
  %467 = vmatprep.subr.bf16.mxu0 0
  %468 = vmatpush1.bf16.msra.mxu0 0
  %469 = vmatprep.subr.bf16.mxu0 0
  %470 = vmatpush1.bf16.msra.mxu0 0
  %471 = vmatprep.subr.bf16.mxu0 0
  %472 = vmatpush1.bf16.msra.mxu0 0
  %473 = vmatprep.subr.bf16.mxu0 0
  %474 = vmatpush1.bf16.msra.mxu0 0
  %475 = vmatprep.subr.bf16.mxu0 0
  %476 = vmatpush1.bf16.msra.mxu0 0
  %477 = vmatprep.subr.bf16.mxu0 0
  %478 = vmatpush1.bf16.msra.mxu0 0
  %479 = vmatprep.subr.bf16.mxu0 0
  %480 = vmatpush1.bf16.msra.mxu0 0
  %481 = vmatprep.subr.bf16.mxu0 0
  %482 = vmatpush1.bf16.msra.mxu0 0
  %483 = vmatprep.subr.bf16.mxu0 0
  %484 = vmatpush1.bf16.msra.mxu0 0
  %485 = vmatprep.subr.bf16.mxu0 0
  %486 = vmatpush1.bf16.msra.mxu0 0
  %487 = vmatprep.mubr.bf16.mxu0 0
  %488 = vmatmul.mubr.bf16.gmra.mrb[0].mxu0 %v453
  %v489 = vpop.f32.mrb[0].mxu0
  %v490 = vadd.f32 0.0, %v489
  %v491 = vpop.f32.mrb[0].mxu0
  %v492 = vpop.f32.mrb[0].mxu0
  %v493 = vpop.f32.mrb[0].mxu0
  %494 = vdwg.mxu0
  %v495 = vld [vmem:[#allocation2 + $0x10] sm:$0xff]
  %v496 = vadd.f32 %v495, %v412
  %v497 = vxor.u32 %v496, 2147483648
  %v498 = vmul.f32 %v497, 1.442695
  %v499 = vpow.pop %v498
  %v500 = vadd.f32 %v499, 1.0
  %v501 = vrcp.pop %v500
  %v502 = vmul.f32 1.0, %v501
  %v503 = vtanh.pop %v496
  %v504 = vmul.f32 %v502, %v363
  %506 = vrot.lane.b32.xlu0 %v503, 64
  %v507 = vpop.permute.xlu0 %506
  %v509 = vmul.f32 %v502, %v507
  %511 = vrot.lane.b32.xlu0 %v509, 32
  %v512 = vpop.permute.xlu0 %511
  %v514 = vadd.f32 %v504, %v512
  %v515 = vtanh.pop %v514
  %517 = vrot.lane.b32.xlu0 %v515, 64
  %v518 = vpop.permute.xlu0 %517
  %v520 = vmul.f32 %v502, %v518
  %v521 = vpack.c.bf16 %v520, %v520
  %523 = vrot.lane.b32.xlu0 %v521, 32
  %v524 = vpop.permute.xlu0 %523
  %v526 = vsel %vm211, %v524, 0
  %528 = vmatprep.subr.bf16.mxu0 %v204
  %529 = vmatpush1.bf16.msra.mxu0 %v203
  %530 = vmatprep.subr.bf16.mxu0 %v206
  %531 = vmatpush1.bf16.msra.mxu0 %v205
  %532 = vmatprep.subr.bf16.mxu0 0
  %533 = vmatpush1.bf16.msra.mxu0 0
  %534 = vmatprep.subr.bf16.mxu0 0
  %535 = vmatpush1.bf16.msra.mxu0 0
  %536 = vmatprep.subr.bf16.mxu0 0
  %537 = vmatpush1.bf16.msra.mxu0 0
  %538 = vmatprep.subr.bf16.mxu0 0
  %539 = vmatpush1.bf16.msra.mxu0 0
  %540 = vmatprep.subr.bf16.mxu0 0
  %541 = vmatpush1.bf16.msra.mxu0 0
  %542 = vmatprep.subr.bf16.mxu0 0
  %543 = vmatpush1.bf16.msra.mxu0 0
  %544 = vmatprep.subr.bf16.mxu0 0
  %545 = vmatpush1.bf16.msra.mxu0 0
  %546 = vmatprep.subr.bf16.mxu0 0
  %547 = vmatpush1.bf16.msra.mxu0 0
  %548 = vmatprep.subr.bf16.mxu0 0
  %549 = vmatpush1.bf16.msra.mxu0 0
  %550 = vmatprep.subr.bf16.mxu0 0
  %551 = vmatpush1.bf16.msra.mxu0 0
  %552 = vmatprep.subr.bf16.mxu0 0
  %553 = vmatpush1.bf16.msra.mxu0 0
  %554 = vmatprep.subr.bf16.mxu0 0
  %555 = vmatpush1.bf16.msra.mxu0 0
  %556 = vmatprep.subr.bf16.mxu0 0
  %557 = vmatpush1.bf16.msra.mxu0 0
  %558 = vmatprep.subr.bf16.mxu0 0
  %559 = vmatpush1.bf16.msra.mxu0 0
  %560 = vmatprep.mubr.bf16.mxu0 0
  %561 = vmatmul.mubr.bf16.gmra.mrb[0].mxu0 %v526
  %v562 = vpop.f32.mrb[0].mxu0
  %v563 = vadd.f32 0.0, %v562
  %v564 = vpop.f32.mrb[0].mxu0
  %v565 = vadd.f32 0.0, %v564
  %v566 = vpop.f32.mrb[0].mxu0
  %v567 = vpop.f32.mrb[0].mxu0
  %568 = vdwg.mxu0
  %v569 = vadd.f32 %v565, %v260
  %v570 = vadd.f32 %v569, %v490
  %v571 = vxor.u32 %v570, 2147483648
  %v572 = vmul.f32 %v571, 1.442695
  %v573 = vpow.pop %v572
  %v574 = vadd.f32 %v573, 1.0
  %v575 = vrcp.pop %v574
  %v576 = vmul.f32 1.0, %v575
  %v577 = vtanh.pop %v570
  %v578 = vmul.f32 %v576, %v441
  %580 = vrot.lane.b32.xlu0 %v577, 64
  %v581 = vpop.permute.xlu0 %580
  %v583 = vmul.f32 %v576, %v581
  %585 = vrot.lane.b32.xlu0 %v583, 32
  %v586 = vpop.permute.xlu0 %585
  %v588 = vadd.f32 %v578, %v586
  %v589 = vtanh.pop %v588
  %591 = vrot.lane.b32.xlu0 %v589, 64
  %v592 = vpop.permute.xlu0 %591
  %v594 = vmul.f32 %v576, %v592
  %v595 = vpack.c.bf16 %v594, %v594
  %597 = vrot.lane.b32.xlu0 %v595, 32
  %v598 = vpop.permute.xlu0 %597
  %v600 = vsel %vm211, %v598, 0
  %602 = vmatprep.subr.bf16.mxu0 0
  %603 = vmatpush1.bf16.msra.mxu0 %v293
  %604 = vmatprep.subr.bf16.mxu0 0
  %605 = vmatpush1.bf16.msra.mxu0 %v294
  %606 = vmatprep.subr.bf16.mxu0 0
  %607 = vmatpush1.bf16.msra.mxu0 0
  %608 = vmatprep.subr.bf16.mxu0 0
  %609 = vmatpush1.bf16.msra.mxu0 0
  %610 = vmatprep.subr.bf16.mxu0 0
  %611 = vmatpush1.bf16.msra.mxu0 0
  %612 = vmatprep.subr.bf16.mxu0 0
  %613 = vmatpush1.bf16.msra.mxu0 0
  %614 = vmatprep.subr.bf16.mxu0 0
  %615 = vmatpush1.bf16.msra.mxu0 0
  %616 = vmatprep.subr.bf16.mxu0 0
  %617 = vmatpush1.bf16.msra.mxu0 0
  %618 = vmatprep.subr.bf16.mxu0 0
  %619 = vmatpush1.bf16.msra.mxu0 0
  %620 = vmatprep.subr.bf16.mxu0 0
  %621 = vmatpush1.bf16.msra.mxu0 0
  %622 = vmatprep.subr.bf16.mxu0 0
  %623 = vmatpush1.bf16.msra.mxu0 0
  %624 = vmatprep.subr.bf16.mxu0 0
  %625 = vmatpush1.bf16.msra.mxu0 0
  %626 = vmatprep.subr.bf16.mxu0 0
  %627 = vmatpush1.bf16.msra.mxu0 0
  %628 = vmatprep.subr.bf16.mxu0 0
  %629 = vmatpush1.bf16.msra.mxu0 0
  %630 = vmatprep.subr.bf16.mxu0 0
  %631 = vmatpush1.bf16.msra.mxu0 0
  %632 = vmatprep.subr.bf16.mxu0 0
  %633 = vmatpush1.bf16.msra.mxu0 0
  %634 = vmatprep.mubr.bf16.mxu0 0
  %635 = vmatmul.mubr.bf16.gmra.mrb[0].mxu0 %v600
  %v636 = vpop.f32.mrb[0].mxu0
  %v637 = vadd.f32 0.0, %v636
  %v638 = vpop.f32.mrb[0].mxu0
  %v639 = vpop.f32.mrb[0].mxu0
  %v640 = vpop.f32.mrb[0].mxu0
  %641 = vdwg.mxu0
  %v642 = vld [vmem:[#allocation2 + $0x18] sm:$0xff]
  %v643 = vadd.f32 %v642, %v563
  %v644 = vxor.u32 %v643, 2147483648
  %v645 = vmul.f32 %v644, 1.442695
  %v646 = vpow.pop %v645
  %v647 = vadd.f32 %v646, 1.0
  %v648 = vrcp.pop %v647
  %v649 = vmul.f32 1.0, %v648
  %v650 = vtanh.pop %v643
  %v651 = vmul.f32 %v649, %v514
  %653 = vrot.lane.b32.xlu0 %v650, 64
  %v654 = vpop.permute.xlu0 %653
  %v656 = vmul.f32 %v649, %v654
  %658 = vrot.lane.b32.xlu0 %v656, 32
  %v659 = vpop.permute.xlu0 %658
  %v661 = vadd.f32 %v651, %v659
  %v662 = vtanh.pop %v661
  %664 = vrot.lane.b32.xlu0 %v662, 64
  %v665 = vpop.permute.xlu0 %664
  %v667 = vmul.f32 %v649, %v665
  %v668 = vpack.c.bf16 %v667, %v667
  %670 = vrot.lane.b32.xlu0 %v668, 32
  %v671 = vpop.permute.xlu0 %670
  %v673 = vsel %vm211, %v671, 0
  %675 = vmatprep.subr.bf16.mxu0 %v204
  %676 = vmatpush1.bf16.msra.mxu0 %v203
  %677 = vmatprep.subr.bf16.mxu0 %v206
  %678 = vmatpush1.bf16.msra.mxu0 %v205
  %679 = vmatprep.subr.bf16.mxu0 0
  %680 = vmatpush1.bf16.msra.mxu0 0
  %681 = vmatprep.subr.bf16.mxu0 0
  %682 = vmatpush1.bf16.msra.mxu0 0
  %683 = vmatprep.subr.bf16.mxu0 0
  %684 = vmatpush1.bf16.msra.mxu0 0
  %685 = vmatprep.subr.bf16.mxu0 0
  %686 = vmatpush1.bf16.msra.mxu0 0
  %687 = vmatprep.subr.bf16.mxu0 0
  %688 = vmatpush1.bf16.msra.mxu0 0
  %689 = vmatprep.subr.bf16.mxu0 0
  %690 = vmatpush1.bf16.msra.mxu0 0
  %691 = vmatprep.subr.bf16.mxu0 0
  %692 = vmatpush1.bf16.msra.mxu0 0
  %693 = vmatprep.subr.bf16.mxu0 0
  %694 = vmatpush1.bf16.msra.mxu0 0
  %695 = vmatprep.subr.bf16.mxu0 0
  %696 = vmatpush1.bf16.msra.mxu0 0
  %697 = vmatprep.subr.bf16.mxu0 0
  %698 = vmatpush1.bf16.msra.mxu0 0
  %699 = vmatprep.subr.bf16.mxu0 0
  %700 = vmatpush1.bf16.msra.mxu0 0
  %701 = vmatprep.subr.bf16.mxu0 0
  %702 = vmatpush1.bf16.msra.mxu0 0
  %703 = vmatprep.subr.bf16.mxu0 0
  %704 = vmatpush1.bf16.msra.mxu0 0
  %705 = vmatprep.subr.bf16.mxu0 0
  %706 = vmatpush1.bf16.msra.mxu0 0
  %707 = vmatprep.mubr.bf16.mxu0 0
  %708 = vmatmul.mubr.bf16.gmra.mrb[0].mxu0 %v673
  %v709 = vpop.f32.mrb[0].mxu0
  %v710 = vadd.f32 0.0, %v709
  %v711 = vpop.f32.mrb[0].mxu0
  %v712 = vadd.f32 0.0, %v711
  %v713 = vpop.f32.mrb[0].mxu0
  %v714 = vpop.f32.mrb[0].mxu0
  %715 = vdwg.mxu0
  %v716 = vadd.f32 %v712, %v260
  %v717 = vadd.f32 %v716, %v637
  %v718 = vxor.u32 %v717, 2147483648
  %v719 = vmul.f32 %v718, 1.442695
  %v720 = vpow.pop %v719
  %v721 = vadd.f32 %v720, 1.0
  %v722 = vrcp.pop %v721
  %v723 = vmul.f32 1.0, %v722
  %v724 = vtanh.pop %v717
  %v725 = vmul.f32 %v723, %v588
  %727 = vrot.lane.b32.xlu0 %v724, 64
  %v728 = vpop.permute.xlu0 %727
  %v730 = vmul.f32 %v723, %v728
  %732 = vrot.lane.b32.xlu0 %v730, 32
  %v733 = vpop.permute.xlu0 %732
  %v735 = vadd.f32 %v725, %v733
  %v736 = vtanh.pop %v735
  %738 = vrot.lane.b32.xlu0 %v736, 64
  %v739 = vpop.permute.xlu0 %738
  %v741 = vmul.f32 %v723, %v739
  %v742 = vpack.c.bf16 %v741, %v741
  %744 = vrot.lane.b32.xlu0 %v742, 32
  %v745 = vpop.permute.xlu0 %744
  %v747 = vsel %vm211, %v745, 0
  %749 = vmatprep.subr.bf16.mxu0 0
  %750 = vmatpush1.bf16.msra.mxu0 %v293
  %751 = vmatprep.subr.bf16.mxu0 0
  %752 = vmatpush1.bf16.msra.mxu0 %v294
  %753 = vmatprep.subr.bf16.mxu0 0
  %754 = vmatpush1.bf16.msra.mxu0 0
  %755 = vmatprep.subr.bf16.mxu0 0
  %756 = vmatpush1.bf16.msra.mxu0 0
  %757 = vmatprep.subr.bf16.mxu0 0
  %758 = vmatpush1.bf16.msra.mxu0 0
  %759 = vmatprep.subr.bf16.mxu0 0
  %760 = vmatpush1.bf16.msra.mxu0 0
  %761 = vmatprep.subr.bf16.mxu0 0
  %762 = vmatpush1.bf16.msra.mxu0 0
  %763 = vmatprep.subr.bf16.mxu0 0
  %764 = vmatpush1.bf16.msra.mxu0 0
  %765 = vmatprep.subr.bf16.mxu0 0
  %766 = vmatpush1.bf16.msra.mxu0 0
  %767 = vmatprep.subr.bf16.mxu0 0
  %768 = vmatpush1.bf16.msra.mxu0 0
  %769 = vmatprep.subr.bf16.mxu0 0
  %770 = vmatpush1.bf16.msra.mxu0 0
  %771 = vmatprep.subr.bf16.mxu0 0
  %772 = vmatpush1.bf16.msra.mxu0 0
  %773 = vmatprep.subr.bf16.mxu0 0
  %774 = vmatpush1.bf16.msra.mxu0 0
  %775 = vmatprep.subr.bf16.mxu0 0
  %776 = vmatpush1.bf16.msra.mxu0 0
  %777 = vmatprep.subr.bf16.mxu0 0
  %778 = vmatpush1.bf16.msra.mxu0 0
  %779 = vmatprep.subr.bf16.mxu0 0
  %780 = vmatpush1.bf16.msra.mxu0 0
  %781 = vmatprep.mubr.bf16.mxu0 0
  %782 = vmatmul.mubr.bf16.gmra.mrb[0].mxu0 %v747
  %v783 = vpop.f32.mrb[0].mxu0
  %v784 = vadd.f32 0.0, %v783
  %v785 = vpop.f32.mrb[0].mxu0
  %v786 = vpop.f32.mrb[0].mxu0
  %v787 = vpop.f32.mrb[0].mxu0
  %788 = vdwg.mxu0
  %v789 = vld [vmem:[#allocation2 + $0x20] sm:$0xff]
  %v790 = vadd.f32 %v789, %v710
  %v791 = vxor.u32 %v790, 2147483648
  %v792 = vmul.f32 %v791, 1.442695
  %v793 = vpow.pop %v792
  %v794 = vadd.f32 %v793, 1.0
  %v795 = vrcp.pop %v794
  %v796 = vmul.f32 1.0, %v795
  %v797 = vtanh.pop %v790
  %v798 = vmul.f32 %v796, %v661
  %800 = vrot.lane.b32.xlu0 %v797, 64
  %v801 = vpop.permute.xlu0 %800
  %v803 = vmul.f32 %v796, %v801
  %805 = vrot.lane.b32.xlu0 %v803, 32
  %v806 = vpop.permute.xlu0 %805
  %v808 = vadd.f32 %v798, %v806
  %v809 = vtanh.pop %v808
  %811 = vrot.lane.b32.xlu0 %v809, 64
  %v812 = vpop.permute.xlu0 %811
  %v814 = vmul.f32 %v796, %v812
  %v815 = vpack.c.bf16 %v814, %v814
  %817 = vrot.lane.b32.xlu0 %v815, 32
  %v818 = vpop.permute.xlu0 %817
  %v820 = vsel %vm211, %v818, 0
  %822 = vmatprep.subr.bf16.mxu0 %v204
  %823 = vmatpush1.bf16.msra.mxu0 %v203
  %824 = vmatprep.subr.bf16.mxu0 %v206
  %825 = vmatpush1.bf16.msra.mxu0 %v205
  %826 = vmatprep.subr.bf16.mxu0 0
  %827 = vmatpush1.bf16.msra.mxu0 0
  %828 = vmatprep.subr.bf16.mxu0 0
  %829 = vmatpush1.bf16.msra.mxu0 0
  %830 = vmatprep.subr.bf16.mxu0 0
  %831 = vmatpush1.bf16.msra.mxu0 0
  %832 = vmatprep.subr.bf16.mxu0 0
  %833 = vmatpush1.bf16.msra.mxu0 0
  %834 = vmatprep.subr.bf16.mxu0 0
  %835 = vmatpush1.bf16.msra.mxu0 0
  %836 = vmatprep.subr.bf16.mxu0 0
  %837 = vmatpush1.bf16.msra.mxu0 0
  %838 = vmatprep.subr.bf16.mxu0 0
  %839 = vmatpush1.bf16.msra.mxu0 0
  %840 = vmatprep.subr.bf16.mxu0 0
  %841 = vmatpush1.bf16.msra.mxu0 0
  %842 = vmatprep.subr.bf16.mxu0 0
  %843 = vmatpush1.bf16.msra.mxu0 0
  %844 = vmatprep.subr.bf16.mxu0 0
  %845 = vmatpush1.bf16.msra.mxu0 0
  %846 = vmatprep.subr.bf16.mxu0 0
  %847 = vmatpush1.bf16.msra.mxu0 0
  %848 = vmatprep.subr.bf16.mxu0 0
  %849 = vmatpush1.bf16.msra.mxu0 0
  %850 = vmatprep.subr.bf16.mxu0 0
  %851 = vmatpush1.bf16.msra.mxu0 0
  %852 = vmatprep.subr.bf16.mxu0 0
  %853 = vmatpush1.bf16.msra.mxu0 0
  %854 = vmatprep.mubr.bf16.mxu0 0
  %855 = vmatmul.mubr.bf16.gmra.mrb[0].mxu0 %v820
  %v856 = vpop.f32.mrb[0].mxu0
  %v857 = vadd.f32 0.0, %v856
  %v858 = vpop.f32.mrb[0].mxu0
  %v859 = vadd.f32 0.0, %v858
  %v860 = vpop.f32.mrb[0].mxu0
  %v861 = vpop.f32.mrb[0].mxu0
  %862 = vdwg.mxu0
  %v863 = vadd.f32 %v859, %v260
  %v864 = vadd.f32 %v863, %v784
  %v865 = vxor.u32 %v864, 2147483648
  %v866 = vmul.f32 %v865, 1.442695
  %v867 = vpow.pop %v866
  %v868 = vadd.f32 %v867, 1.0
  %v869 = vrcp.pop %v868
  %v870 = vmul.f32 1.0, %v869
  %v871 = vtanh.pop %v864
  %v872 = vmul.f32 %v870, %v735
  %874 = vrot.lane.b32.xlu0 %v871, 64
  %v875 = vpop.permute.xlu0 %874
  %v877 = vmul.f32 %v870, %v875
  %879 = vrot.lane.b32.xlu0 %v877, 32
  %v880 = vpop.permute.xlu0 %879
  %v882 = vadd.f32 %v872, %v880
  %v883 = vtanh.pop %v882
  %885 = vrot.lane.b32.xlu0 %v883, 64
  %v886 = vpop.permute.xlu0 %885
  %v888 = vmul.f32 %v870, %v886
  %v889 = vpack.c.bf16 %v888, %v888
  %891 = vrot.lane.b32.xlu0 %v889, 32
  %v892 = vpop.permute.xlu0 %891
  %v894 = vsel %vm211, %v892, 0
  %896 = vmatprep.subr.bf16.mxu0 0
  %897 = vmatpush1.bf16.msra.mxu0 %v293
  %898 = vmatprep.subr.bf16.mxu0 0
  %899 = vmatpush1.bf16.msra.mxu0 %v294
  %900 = vmatprep.subr.bf16.mxu0 0
  %901 = vmatpush1.bf16.msra.mxu0 0
  %902 = vmatprep.subr.bf16.mxu0 0
  %903 = vmatpush1.bf16.msra.mxu0 0
  %904 = vmatprep.subr.bf16.mxu0 0
  %905 = vmatpush1.bf16.msra.mxu0 0
  %906 = vmatprep.subr.bf16.mxu0 0
  %907 = vmatpush1.bf16.msra.mxu0 0
  %908 = vmatprep.subr.bf16.mxu0 0
  %909 = vmatpush1.bf16.msra.mxu0 0
  %910 = vmatprep.subr.bf16.mxu0 0
  %911 = vmatpush1.bf16.msra.mxu0 0
  %912 = vmatprep.subr.bf16.mxu0 0
  %913 = vmatpush1.bf16.msra.mxu0 0
  %914 = vmatprep.subr.bf16.mxu0 0
  %915 = vmatpush1.bf16.msra.mxu0 0
  %916 = vmatprep.subr.bf16.mxu0 0
  %917 = vmatpush1.bf16.msra.mxu0 0
  %918 = vmatprep.subr.bf16.mxu0 0
  %919 = vmatpush1.bf16.msra.mxu0 0
  %920 = vmatprep.subr.bf16.mxu0 0
  %921 = vmatpush1.bf16.msra.mxu0 0
  %922 = vmatprep.subr.bf16.mxu0 0
  %923 = vmatpush1.bf16.msra.mxu0 0
  %924 = vmatprep.subr.bf16.mxu0 0
  %925 = vmatpush1.bf16.msra.mxu0 0
  %926 = vmatprep.subr.bf16.mxu0 0
  %927 = vmatpush1.bf16.msra.mxu0 0
  %928 = vmatprep.mubr.bf16.mxu0 0
  %929 = vmatmul.mubr.bf16.gmra.mrb[0].mxu0 %v894
  %v930 = vpop.f32.mrb[0].mxu0
  %v931 = vadd.f32 0.0, %v930
  %v932 = vpop.f32.mrb[0].mxu0
  %v933 = vpop.f32.mrb[0].mxu0
  %v934 = vpop.f32.mrb[0].mxu0
  %935 = vdwg.mxu0
  %v936 = vld [vmem:[#allocation2 + $0x28] sm:$0xff]
  %v937 = vadd.f32 %v936, %v857
  %v938 = vxor.u32 %v937, 2147483648
  %v939 = vmul.f32 %v938, 1.442695
  %v940 = vpow.pop %v939
  %v941 = vadd.f32 %v940, 1.0
  %v942 = vrcp.pop %v941
  %v943 = vmul.f32 1.0, %v942
  %v944 = vtanh.pop %v937
  %v945 = vmul.f32 %v943, %v808
  %947 = vrot.lane.b32.xlu0 %v944, 64
  %v948 = vpop.permute.xlu0 %947
  %v950 = vmul.f32 %v943, %v948
  %952 = vrot.lane.b32.xlu0 %v950, 32
  %v953 = vpop.permute.xlu0 %952
  %v955 = vadd.f32 %v945, %v953
  %v956 = vtanh.pop %v955
  %958 = vrot.lane.b32.xlu0 %v956, 64
  %v959 = vpop.permute.xlu0 %958
  %v961 = vmul.f32 %v943, %v959
  %v962 = vpack.c.bf16 %v961, %v961
  %964 = vrot.lane.b32.xlu0 %v962, 32
  %v965 = vpop.permute.xlu0 %964
  %v967 = vsel %vm211, %v965, 0
  %969 = vmatprep.subr.bf16.mxu0 %v204
  %970 = vmatpush1.bf16.msra.mxu0 %v203
  %971 = vmatprep.subr.bf16.mxu0 %v206
  %972 = vmatpush1.bf16.msra.mxu0 %v205
  %973 = vmatprep.subr.bf16.mxu0 0
  %974 = vmatpush1.bf16.msra.mxu0 0
  %975 = vmatprep.subr.bf16.mxu0 0
  %976 = vmatpush1.bf16.msra.mxu0 0
  %977 = vmatprep.subr.bf16.mxu0 0
  %978 = vmatpush1.bf16.msra.mxu0 0
  %979 = vmatprep.subr.bf16.mxu0 0
  %980 = vmatpush1.bf16.msra.mxu0 0
  %981 = vmatprep.subr.bf16.mxu0 0
  %982 = vmatpush1.bf16.msra.mxu0 0
  %983 = vmatprep.subr.bf16.mxu0 0
  %984 = vmatpush1.bf16.msra.mxu0 0
  %985 = vmatprep.subr.bf16.mxu0 0
  %986 = vmatpush1.bf16.msra.mxu0 0
  %987 = vmatprep.subr.bf16.mxu0 0
  %988 = vmatpush1.bf16.msra.mxu0 0
  %989 = vmatprep.subr.bf16.mxu0 0
  %990 = vmatpush1.bf16.msra.mxu0 0
  %991 = vmatprep.subr.bf16.mxu0 0
  %992 = vmatpush1.bf16.msra.mxu0 0
  %993 = vmatprep.subr.bf16.mxu0 0
  %994 = vmatpush1.bf16.msra.mxu0 0
  %995 = vmatprep.subr.bf16.mxu0 0
  %996 = vmatpush1.bf16.msra.mxu0 0
  %997 = vmatprep.subr.bf16.mxu0 0
  %998 = vmatpush1.bf16.msra.mxu0 0
  %999 = vmatprep.subr.bf16.mxu0 0
  %1000 = vmatpush1.bf16.msra.mxu0 0
  %1001 = vmatprep.mubr.bf16.mxu0 0
  %1002 = vmatmul.mubr.bf16.gmra.mrb[0].mxu0 %v967
  %v1003 = vpop.f32.mrb[0].mxu0
  %v1004 = vadd.f32 0.0, %v1003
  %v1005 = vpop.f32.mrb[0].mxu0
  %v1006 = vadd.f32 0.0, %v1005
  %v1007 = vpop.f32.mrb[0].mxu0
  %v1008 = vpop.f32.mrb[0].mxu0
  %1009 = vdwg.mxu0
  %v1010 = vadd.f32 %v1006, %v260
  %v1011 = vadd.f32 %v1010, %v931
  %v1012 = vxor.u32 %v1011, 2147483648
  %v1013 = vmul.f32 %v1012, 1.442695
  %v1014 = vpow.pop %v1013
  %v1015 = vadd.f32 %v1014, 1.0
  %v1016 = vrcp.pop %v1015
  %v1017 = vmul.f32 1.0, %v1016
  %v1018 = vtanh.pop %v1011
  %v1019 = vmul.f32 %v1017, %v882
  %1021 = vrot.lane.b32.xlu0 %v1018, 64
  %v1022 = vpop.permute.xlu0 %1021
  %v1024 = vmul.f32 %v1017, %v1022
  %1026 = vrot.lane.b32.xlu0 %v1024, 32
  %v1027 = vpop.permute.xlu0 %1026
  %v1029 = vadd.f32 %v1019, %v1027
  %v1030 = vtanh.pop %v1029
  %1032 = vrot.lane.b32.xlu0 %v1030, 64
  %v1033 = vpop.permute.xlu0 %1032
  %v1035 = vmul.f32 %v1017, %v1033
  %v1036 = vpack.c.bf16 %v1035, %v1035
  %1038 = vrot.lane.b32.xlu0 %v1036, 32
  %v1039 = vpop.permute.xlu0 %1038
  %v1041 = vsel %vm211, %v1039, 0
  %1043 = vmatprep.subr.bf16.mxu0 0
  %1044 = vmatpush1.bf16.msra.mxu0 %v293
  %1045 = vmatprep.subr.bf16.mxu0 0
  %1046 = vmatpush1.bf16.msra.mxu0 %v294
  %1047 = vmatprep.subr.bf16.mxu0 0
  %1048 = vmatpush1.bf16.msra.mxu0 0
  %1049 = vmatprep.subr.bf16.mxu0 0
  %1050 = vmatpush1.bf16.msra.mxu0 0
  %1051 = vmatprep.subr.bf16.mxu0 0
  %1052 = vmatpush1.bf16.msra.mxu0 0
  %1053 = vmatprep.subr.bf16.mxu0 0
  %1054 = vmatpush1.bf16.msra.mxu0 0
  %1055 = vmatprep.subr.bf16.mxu0 0
  %1056 = vmatpush1.bf16.msra.mxu0 0
  %1057 = vmatprep.subr.bf16.mxu0 0
  %1058 = vmatpush1.bf16.msra.mxu0 0
  %1059 = vmatprep.subr.bf16.mxu0 0
  %1060 = vmatpush1.bf16.msra.mxu0 0
  %1061 = vmatprep.subr.bf16.mxu0 0
  %1062 = vmatpush1.bf16.msra.mxu0 0
  %1063 = vmatprep.subr.bf16.mxu0 0
  %1064 = vmatpush1.bf16.msra.mxu0 0
  %1065 = vmatprep.subr.bf16.mxu0 0
  %1066 = vmatpush1.bf16.msra.mxu0 0
  %1067 = vmatprep.subr.bf16.mxu0 0
  %1068 = vmatpush1.bf16.msra.mxu0 0
  %1069 = vmatprep.subr.bf16.mxu0 0
  %1070 = vmatpush1.bf16.msra.mxu0 0
  %1071 = vmatprep.subr.bf16.mxu0 0
  %1072 = vmatpush1.bf16.msra.mxu0 0
  %1073 = vmatprep.subr.bf16.mxu0 0
  %1074 = vmatpush1.bf16.msra.mxu0 0
  %1075 = vmatprep.mubr.bf16.mxu0 0
  %1076 = vmatmul.mubr.bf16.gmra.mrb[0].mxu0 %v1041
  %v1077 = vpop.f32.mrb[0].mxu0
  %v1078 = vadd.f32 0.0, %v1077
  %v1079 = vpop.f32.mrb[0].mxu0
  %v1080 = vpop.f32.mrb[0].mxu0
  %v1081 = vpop.f32.mrb[0].mxu0
  %1082 = vdwg.mxu0
  %v1083 = vld [vmem:[#allocation2 + $0x30] sm:$0xff]
  %v1084 = vadd.f32 %v1083, %v1004
  %v1085 = vxor.u32 %v1084, 2147483648
  %v1086 = vmul.f32 %v1085, 1.442695
  %v1087 = vpow.pop %v1086
  %v1088 = vadd.f32 %v1087, 1.0
  %v1089 = vrcp.pop %v1088
  %v1090 = vmul.f32 1.0, %v1089
  %v1091 = vtanh.pop %v1084
  %v1092 = vmul.f32 %v1090, %v955
  %1094 = vrot.lane.b32.xlu0 %v1091, 64
  %v1095 = vpop.permute.xlu0 %1094
  %v1097 = vmul.f32 %v1090, %v1095
  %1099 = vrot.lane.b32.xlu0 %v1097, 32
  %v1100 = vpop.permute.xlu0 %1099
  %v1102 = vadd.f32 %v1092, %v1100
  %v1103 = vtanh.pop %v1102
  %1105 = vrot.lane.b32.xlu0 %v1103, 64
  %v1106 = vpop.permute.xlu0 %1105
  %v1108 = vmul.f32 %v1090, %v1106
  %v1109 = vpack.c.bf16 %v1108, %v1108
  %1111 = vrot.lane.b32.xlu0 %v1109, 32
  %v1112 = vpop.permute.xlu0 %1111
  %v1114 = vsel %vm211, %v1112, 0
  %1116 = vmatprep.subr.bf16.mxu0 %v204
  %1117 = vmatpush1.bf16.msra.mxu0 %v203
  %1118 = vmatprep.subr.bf16.mxu0 %v206
  %1119 = vmatpush1.bf16.msra.mxu0 %v205
  %1120 = vmatprep.subr.bf16.mxu0 0
  %1121 = vmatpush1.bf16.msra.mxu0 0
  %1122 = vmatprep.subr.bf16.mxu0 0
  %1123 = vmatpush1.bf16.msra.mxu0 0
  %1124 = vmatprep.subr.bf16.mxu0 0
  %1125 = vmatpush1.bf16.msra.mxu0 0
  %1126 = vmatprep.subr.bf16.mxu0 0
  %1127 = vmatpush1.bf16.msra.mxu0 0
  %1128 = vmatprep.subr.bf16.mxu0 0
  %1129 = vmatpush1.bf16.msra.mxu0 0
  %1130 = vmatprep.subr.bf16.mxu0 0
  %1131 = vmatpush1.bf16.msra.mxu0 0
  %1132 = vmatprep.subr.bf16.mxu0 0
  %1133 = vmatpush1.bf16.msra.mxu0 0
  %1134 = vmatprep.subr.bf16.mxu0 0
  %1135 = vmatpush1.bf16.msra.mxu0 0
  %1136 = vmatprep.subr.bf16.mxu0 0
  %1137 = vmatpush1.bf16.msra.mxu0 0
  %1138 = vmatprep.subr.bf16.mxu0 0
  %1139 = vmatpush1.bf16.msra.mxu0 0
  %1140 = vmatprep.subr.bf16.mxu0 0
  %1141 = vmatpush1.bf16.msra.mxu0 0
  %1142 = vmatprep.subr.bf16.mxu0 0
  %1143 = vmatpush1.bf16.msra.mxu0 0
  %1144 = vmatprep.subr.bf16.mxu0 0
  %1145 = vmatpush1.bf16.msra.mxu0 0
  %1146 = vmatprep.subr.bf16.mxu0 0
  %1147 = vmatpush1.bf16.msra.mxu0 0
  %1148 = vmatprep.mubr.bf16.mxu0 0
  %1149 = vmatmul.mubr.bf16.gmra.mrb[0].mxu0 %v1114
  %v1150 = vpop.f32.mrb[0].mxu0
  %v1151 = vadd.f32 0.0, %v1150
  %v1152 = vpop.f32.mrb[0].mxu0
  %v1153 = vadd.f32 0.0, %v1152
  %v1154 = vpop.f32.mrb[0].mxu0
  %v1155 = vpop.f32.mrb[0].mxu0
  %1156 = vdwg.mxu0
  %v1157 = vadd.f32 %v1153, %v260
  %v1158 = vadd.f32 %v1157, %v1078
  %v1159 = vxor.u32 %v1158, 2147483648
  %v1160 = vmul.f32 %v1159, 1.442695
  %v1161 = vpow.pop %v1160
  %v1162 = vadd.f32 %v1161, 1.0
  %v1163 = vrcp.pop %v1162
  %v1164 = vmul.f32 1.0, %v1163
  %v1165 = vtanh.pop %v1158
  %v1166 = vmul.f32 %v1164, %v1029
  %1168 = vrot.lane.b32.xlu0 %v1165, 64
  %v1169 = vpop.permute.xlu0 %1168
  %v1171 = vmul.f32 %v1164, %v1169
  %1173 = vrot.lane.b32.xlu0 %v1171, 32
  %v1174 = vpop.permute.xlu0 %1173
  %v1176 = vadd.f32 %v1166, %v1174
  %v1177 = vtanh.pop %v1176
  %1179 = vrot.lane.b32.xlu0 %v1177, 64
  %v1180 = vpop.permute.xlu0 %1179
  %v1182 = vmul.f32 %v1164, %v1180
  %v1183 = vpack.c.bf16 %v1182, %v1182
  %1185 = vrot.lane.b32.xlu0 %v1183, 32
  %v1186 = vpop.permute.xlu0 %1185
  %v1188 = vsel %vm211, %v1186, 0
  %1190 = vmatprep.subr.bf16.mxu0 0
  %1191 = vmatpush1.bf16.msra.mxu0 %v293
  %1192 = vmatprep.subr.bf16.mxu0 0
  %1193 = vmatpush1.bf16.msra.mxu0 %v294
  %1194 = vmatprep.subr.bf16.mxu0 0
  %1195 = vmatpush1.bf16.msra.mxu0 0
  %1196 = vmatprep.subr.bf16.mxu0 0
  %1197 = vmatpush1.bf16.msra.mxu0 0
  %1198 = vmatprep.subr.bf16.mxu0 0
  %1199 = vmatpush1.bf16.msra.mxu0 0
  %1200 = vmatprep.subr.bf16.mxu0 0
  %1201 = vmatpush1.bf16.msra.mxu0 0
  %1202 = vmatprep.subr.bf16.mxu0 0
  %1203 = vmatpush1.bf16.msra.mxu0 0
  %1204 = vmatprep.subr.bf16.mxu0 0
  %1205 = vmatpush1.bf16.msra.mxu0 0
  %1206 = vmatprep.subr.bf16.mxu0 0
  %1207 = vmatpush1.bf16.msra.mxu0 0
  %1208 = vmatprep.subr.bf16.mxu0 0
  %1209 = vmatpush1.bf16.msra.mxu0 0
  %1210 = vmatprep.subr.bf16.mxu0 0
  %1211 = vmatpush1.bf16.msra.mxu0 0
  %1212 = vmatprep.subr.bf16.mxu0 0
  %1213 = vmatpush1.bf16.msra.mxu0 0
  %1214 = vmatprep.subr.bf16.mxu0 0
  %1215 = vmatpush1.bf16.msra.mxu0 0
  %1216 = vmatprep.subr.bf16.mxu0 0
  %1217 = vmatpush1.bf16.msra.mxu0 0
  %1218 = vmatprep.subr.bf16.mxu0 0
  %1219 = vmatpush1.bf16.msra.mxu0 0
  %1220 = vmatprep.subr.bf16.mxu0 0
  %1221 = vmatpush1.bf16.msra.mxu0 0
  %1222 = vmatprep.mubr.bf16.mxu0 0
  %1223 = vmatmul.mubr.bf16.gmra.mrb[0].mxu0 %v1188
  %v1224 = vpop.f32.mrb[0].mxu0
  %v1225 = vadd.f32 0.0, %v1224
  %v1226 = vpop.f32.mrb[0].mxu0
  %v1227 = vpop.f32.mrb[0].mxu0
  %v1228 = vpop.f32.mrb[0].mxu0
  %1229 = vdwg.mxu0
  %v1230 = vld [vmem:[#allocation2 + $0x38] sm:$0xff]
  %v1231 = vadd.f32 %v1230, %v1151
  %v1232 = vxor.u32 %v1231, 2147483648
  %v1233 = vmul.f32 %v1232, 1.442695
  %v1234 = vpow.pop %v1233
  %v1235 = vadd.f32 %v1234, 1.0
  %v1236 = vrcp.pop %v1235
  %v1237 = vmul.f32 1.0, %v1236
  %v1238 = vtanh.pop %v1231
  %v1239 = vmul.f32 %v1237, %v1102
  %1241 = vrot.lane.b32.xlu0 %v1238, 64
  %v1242 = vpop.permute.xlu0 %1241
  %v1244 = vmul.f32 %v1237, %v1242
  %1246 = vrot.lane.b32.xlu0 %v1244, 32
  %v1247 = vpop.permute.xlu0 %1246
  %v1249 = vadd.f32 %v1239, %v1247
  %v1250 = vtanh.pop %v1249
  %1252 = vrot.lane.b32.xlu0 %v1250, 64
  %v1253 = vpop.permute.xlu0 %1252
  %v1255 = vmul.f32 %v1237, %v1253
  %v1256 = vpack.c.bf16 %v1255, %v1255
  %1258 = vrot.lane.b32.xlu0 %v1256, 32
  %v1259 = vpop.permute.xlu0 %1258
  %v1261 = vsel %vm211, %v1259, 0
  %1263 = vmatprep.subr.bf16.mxu0 %v204
  %1264 = vmatpush1.bf16.msra.mxu0 %v203
  %1265 = vmatprep.subr.bf16.mxu0 %v206
  %1266 = vmatpush1.bf16.msra.mxu0 %v205
  %1267 = vmatprep.subr.bf16.mxu0 0
  %1268 = vmatpush1.bf16.msra.mxu0 0
  %1269 = vmatprep.subr.bf16.mxu0 0
  %1270 = vmatpush1.bf16.msra.mxu0 0
  %1271 = vmatprep.subr.bf16.mxu0 0
  %1272 = vmatpush1.bf16.msra.mxu0 0
  %1273 = vmatprep.subr.bf16.mxu0 0
  %1274 = vmatpush1.bf16.msra.mxu0 0
  %1275 = vmatprep.subr.bf16.mxu0 0
  %1276 = vmatpush1.bf16.msra.mxu0 0
  %1277 = vmatprep.subr.bf16.mxu0 0
  %1278 = vmatpush1.bf16.msra.mxu0 0
  %1279 = vmatprep.subr.bf16.mxu0 0
  %1280 = vmatpush1.bf16.msra.mxu0 0
  %1281 = vmatprep.subr.bf16.mxu0 0
  %1282 = vmatpush1.bf16.msra.mxu0 0
  %1283 = vmatprep.subr.bf16.mxu0 0
  %1284 = vmatpush1.bf16.msra.mxu0 0
  %1285 = vmatprep.subr.bf16.mxu0 0
  %1286 = vmatpush1.bf16.msra.mxu0 0
  %1287 = vmatprep.subr.bf16.mxu0 0
  %1288 = vmatpush1.bf16.msra.mxu0 0
  %1289 = vmatprep.subr.bf16.mxu0 0
  %1290 = vmatpush1.bf16.msra.mxu0 0
  %1291 = vmatprep.subr.bf16.mxu0 0
  %1292 = vmatpush1.bf16.msra.mxu0 0
  %1293 = vmatprep.subr.bf16.mxu0 0
  %1294 = vmatpush1.bf16.msra.mxu0 0
  %1295 = vmatprep.mubr.bf16.mxu0 0
  %1296 = vmatmul.mubr.bf16.gmra.mrb[0].mxu0 %v1261
  %v1297 = vpop.f32.mrb[0].mxu0
  %v1298 = vpop.f32.mrb[0].mxu0
  %v1299 = vadd.f32 0.0, %v1298
  %v1300 = vpop.f32.mrb[0].mxu0
  %v1301 = vpop.f32.mrb[0].mxu0
  %1302 = vdwg.mxu0
  %v1303 = vadd.f32 %v1299, %v260
  %v1304 = vadd.f32 %v1303, %v1225
  %v1305 = vxor.u32 %v1304, 2147483648
  %v1306 = vmul.f32 %v1305, 1.442695
  %v1307 = vpow.pop %v1306
  %v1308 = vadd.f32 %v1307, 1.0
  %v1309 = vrcp.pop %v1308
  %v1310 = vmul.f32 1.0, %v1309
  %v1311 = vtanh.pop %v1304
  %v1312 = vmul.f32 %v1310, %v1176
  %1314 = vrot.lane.b32.xlu0 %v1311, 64
  %v1315 = vpop.permute.xlu0 %1314
  %v1317 = vmul.f32 %v1310, %v1315
  %1319 = vrot.lane.b32.xlu0 %v1317, 32
  %v1320 = vpop.permute.xlu0 %1319
  %v1322 = vadd.f32 %v1312, %v1320
  %v1323 = vtanh.pop %v1322
  %1325 = vrot.lane.b32.xlu0 %v1323, 64
  %v1326 = vpop.permute.xlu0 %1325
  %v1328 = vmul.f32 %v1310, %v1326
  %v1329 = vpack.c.bf16 %v1328, %v1328
  %v1330 = vld [vmem:[%s7] sm:$0xf]
  %v1331 = vld [vmem:[%s7 + $0x4] sm:$0xf]
  %v1332 = vld [vmem:[%s7 + $0x8] sm:$0xf]
  %v1333 = vld [vmem:[%s7 + $0xc] sm:$0xf]
  %v1334 = vld [vmem:[%s1] sm:$0xff]
  %1336 = vrot.lane.b32.xlu0 %v1329, 32
  %v1337 = vpop.permute.xlu0 %1336
  %v1342 = vunpack.c.l.b16 %v1330
  %v1343 = vunpack.c.l.b16 %v1331
  %v1344 = vunpack.c.l.b16 %v1332
  %v1345 = vunpack.c.l.b16 %v1333
  %v1346 = vpack.c.b16 %v1343, %v1342
  %v1347 = vpack.c.b16 %v1345, %v1344
  %v1351 = vsel %vm211, %v1337, 0
  %1353 = vmatprep.subr.bf16.mxu0 0
  %1354 = vmatpush1.bf16.msra.mxu0 %v1346
  %1355 = vmatprep.subr.bf16.mxu0 0
  %1356 = vmatpush1.bf16.msra.mxu0 %v1347
  %1357 = vmatprep.subr.bf16.mxu0 0
  %1358 = vmatpush1.bf16.msra.mxu0 0
  %1359 = vmatprep.subr.bf16.mxu0 0
  %1360 = vmatpush1.bf16.msra.mxu0 0
  %1361 = vmatprep.subr.bf16.mxu0 0
  %1362 = vmatpush1.bf16.msra.mxu0 0
  %1363 = vmatprep.subr.bf16.mxu0 0
  %1364 = vmatpush1.bf16.msra.mxu0 0
  %1365 = vmatprep.subr.bf16.mxu0 0
  %1366 = vmatpush1.bf16.msra.mxu0 0
  %1367 = vmatprep.subr.bf16.mxu0 0
  %1368 = vmatpush1.bf16.msra.mxu0 0
  %1369 = vmatprep.subr.bf16.mxu0 0
  %1370 = vmatpush1.bf16.msra.mxu0 0
  %1371 = vmatprep.subr.bf16.mxu0 0
  %1372 = vmatpush1.bf16.msra.mxu0 0
  %1373 = vmatprep.subr.bf16.mxu0 0
  %1374 = vmatpush1.bf16.msra.mxu0 0
  %1375 = vmatprep.subr.bf16.mxu0 0
  %1376 = vmatpush1.bf16.msra.mxu0 0
  %1377 = vmatprep.subr.bf16.mxu0 0
  %1378 = vmatpush1.bf16.msra.mxu0 0
  %1379 = vmatprep.subr.bf16.mxu0 0
  %1380 = vmatpush1.bf16.msra.mxu0 0
  %1381 = vmatprep.subr.bf16.mxu0 0
  %1382 = vmatpush1.bf16.msra.mxu0 0
  %1383 = vmatprep.subr.bf16.mxu0 0
  %1384 = vmatpush1.bf16.msra.mxu0 0
  %1385 = vmatprep.mubr.bf16.mxu0 0
  %1386 = vmatmul.mubr.bf16.gmra.mrb[0].mxu0 %v1351
  %v1387 = vpop.f32.mrb[0].mxu0
  %v1388 = vadd.f32 %v1334, %v1387
  %v1389 = vpop.f32.mrb[0].mxu0
  %v1390 = vpop.f32.mrb[0].mxu0
  %v1391 = vpop.f32.mrb[0].mxu0
  %1392 = vdwg.mxu0
  %1393 = vst.msk [vmem:[%s8] sm:$0xff] %vm73, %v1388
  // Predicated region
  $region34: #{embed_rnn_forward.1} parent=0 // pred_check
    _
  $region35: #{embed_rnn_forward.1} parent=0 // pred_check_branch
    %1395 = sbr.rel (0) target = $region37
  $region36: #{embed_rnn_forward.1} parent=0 // pred_region
    _
  $region37: #{embed_rnn_forward.1} parent=0 // pred_fallthru
    _
  // Predicated region
  $region38: #{embed_rnn_forward.1} parent=0 // pred_check
    _
  $region39: #{embed_rnn_forward.1} parent=0 // pred_check_branch
    %1397 = sbr.rel (0) target = $region41
  $region40: #{embed_rnn_forward.1} parent=0 // pred_region
    _
  $region41: #{embed_rnn_forward.1} parent=0 // pred_fallthru
    _

</llo_original>
